<compile_context>
chip_gen: v7x
topology: tpu7x:2x2x1
jax: 0.10.0
libtpu: 0.0.40
codegen_flags: <defaults>
</compile_context>

<pallas_src>
import jax
import jax.numpy as jnp
from jax import lax
from jax.experimental import pallas as pl
from jax.experimental.pallas import tpu as pltpu


def _round_up(x, m):
    return (x + m - 1) // m * m


def _make_infonce_kernel(inv_temp, need_col_mask):
    def kernel(xr_ref, xc_ref, invr_ref, labr_ref, invc_ref, labc_ref,
               bias_ref, out_ref, lhs_sc, m_sc, l_sc, a_sc, c_sc):
        j = pl.program_id(1)

        @pl.when(j == 0)
        def _init():
            # Row block stays resident across the whole column sweep; fold the
            # per-row scale (inv_temp / ||x_row||) into it exactly once.
            lhs_sc[...] = xr_ref[...] * (invr_ref[...] * inv_temp)  # [TM, Dp]
            m_sc[...] = jnp.full_like(m_sc, -1e30)
            l_sc[...] = jnp.zeros_like(l_sc)
            a_sc[...] = jnp.zeros_like(a_sc)
            c_sc[...] = jnp.zeros_like(c_sc)

        # logits tile = (x_r / (T*||x_r||)) @ x_c^T * (1/||x_c||)
        # MXU contraction of dim 1 of both operands (no transpose materialized);
        # column-side normalization is a cheap [1, TN] broadcast after the matmul.
        raw = lax.dot_general(lhs_sc[...], xc_ref[...],
                              (((1,), (1,)), ((), ())),
                              preferred_element_type=jnp.float32)   # [TM, TN]
        logits = raw * invc_ref[...]
        if need_col_mask:
            # -1e30 on zero-padded columns (excluded from the softmax denom;
            # positive sums are already safe because padded labels never match).
            logits = logits + bias_ref[...]

        same = (labr_ref[...] == labc_ref[...]).astype(jnp.float32)  # [TM, TN]

        # --- online logsumexp across column tiles ---
        m_prev = m_sc[...]
        m_new = jnp.maximum(m_prev, jnp.max(logits, axis=1, keepdims=True))
        alpha = jnp.exp(m_prev - m_new)
        p = jnp.exp(logits - m_new)
        l_sc[...] = alpha * l_sc[...] + jnp.sum(p, axis=1, keepdims=True)
        m_sc[...] = m_new

        # --- running positive-pair sums (diagonal included; removed later) ---
        a_sc[...] += jnp.sum(same * logits, axis=1, keepdims=True)
        c_sc[...] += jnp.sum(same, axis=1, keepdims=True)

        @pl.when(j == pl.num_programs(1) - 1)
        def _finalize():
            lse = m_sc[...] + jnp.log(l_sc[...])          # [TM, 1]
            pos_cnt = c_sc[...] - 1.0                     # exclude self-pair
            # diag logit of an L2-normalized row is exactly 1/temperature
            pos_sum = (a_sc[...] - inv_temp) - pos_cnt * lse
            # NOTE: pos_cnt == 0 (class with a single sample) yields NaN,
            # matching the PyTorch module's implicit assumption.
            out_ref[...] = pos_sum / pos_cnt              # mean_log_prob_pos

    return kernel


def infonce_loss_pallas(features, labels, temperature=0.07):
    """features: [N, D] float, labels: [N] int -> scalar f32 loss."""
    n, d = features.shape
    d_pad = _round_up(d, 128)
    n128 = _round_up(n, 128)

    # Tile sizes: 128-aligned; shrink the column tile for very wide embeddings
    # so double-buffered blocks + the cached LHS stay well under the VMEM limit.
    if n128 <= 512:
        tm = tn = n_pad = n128
    else:
        tm = 256
        tn = 512 if d_pad <= 2048 else 256
        n_pad = _round_up(n, 512)

    inv_temp = float(1.0 / temperature)

    x = features.astype(jnp.float32)
    # Inverse L2 norms once in O(N*D) (PyTorch F.normalize: x / max(||x||,1e-12)
    # == x * rsqrt(max(||x||^2, 1e-24))) -- avoids O(N^2*D/TM) in-kernel recompute.
    inv_norm = lax.rsqrt(jnp.maximum(jnp.sum(x * x, axis=1), 1e-24))   # [N]

    x = jnp.pad(x, ((0, n_pad - n), (0, d_pad - d)))
    inv_norm = jnp.pad(inv_norm, (0, n_pad - n))

    lab = labels.reshape(-1).astype(jnp.int32)
    if n_pad > n:
        sentinel = jnp.min(lab) - 1            # never matches a real label
        lab = jnp.concatenate(
            [lab, jnp.full((n_pad - n,), sentinel, dtype=jnp.int32)])

    inv_r = inv_norm.reshape(n_pad, 1)         # row-layout scales (sublane axis)
    inv_c = inv_norm.reshape(1, n_pad)         # col-layout scales (lane axis)
    lab_r = lab.reshape(n_pad, 1)
    lab_c = lab.reshape(1, n_pad)
    col_bias = jnp.where(jnp.arange(n_pad) < n, 0.0, -1e30).astype(
        jnp.float32).reshape(1, n_pad)
    need_col_mask = n_pad != n

    grid = (n_pad // tm, n_pad // tn)
    kernel = _make_infonce_kernel(inv_temp, need_col_mask)

    mlpp = pl.pallas_call(
        kernel,
        out_shape=jax.ShapeDtypeStruct((n_pad, 1), jnp.float32),
        grid_spec=pltpu.PrefetchScalarGridSpec(
            num_scalar_prefetch=0,
            grid=grid,
            in_specs=[
                pl.BlockSpec((tm, d_pad), lambda i, j: (i, 0)),  # row features
                pl.BlockSpec((tn, d_pad), lambda i, j: (j, 0)),  # col features
                pl.BlockSpec((tm, 1), lambda i, j: (i, 0)),      # row 1/||x||
                pl.BlockSpec((tm, 1), lambda i, j: (i, 0)),      # row labels
                pl.BlockSpec((1, tn), lambda i, j: (0, j)),      # col 1/||x||
                pl.BlockSpec((1, tn), lambda i, j: (0, j)),      # col labels
                pl.BlockSpec((1, tn), lambda i, j: (0, j)),      # col pad bias
            ],
            out_specs=pl.BlockSpec((tm, 1), lambda i, j: (i, 0)),
            scratch_shapes=[
                pltpu.VMEM((tm, d_pad), jnp.float32),  # cached scaled LHS
                pltpu.VMEM((tm, 1), jnp.float32),      # running max
                pltpu.VMEM((tm, 1), jnp.float32),      # running denom
                pltpu.VMEM((tm, 1), jnp.float32),      # running pos logit sum
                pltpu.VMEM((tm, 1), jnp.float32),      # running pos count
            ],
        ),
        compiler_params=pltpu.CompilerParams(
            dimension_semantics=("parallel", "arbitrary"),
            vmem_limit_bytes=48 * 1024 * 1024,
        ),
    )(x, x, inv_r, lab_r, inv_c, lab_c, col_bias)

    # Final reduction over valid rows (tiny O(N) epilogue outside the kernel,
    # because the row-tile axis is split across TensorCores).
    return -jnp.mean(mlpp[:n, 0])


def infonce_loss_ref(features, labels, temperature=0.07):
    """Pure-JAX reference mirroring the PyTorch module exactly."""
    x = features.astype(jnp.float32)
    xn = x / jnp.maximum(jnp.linalg.norm(x, axis=1, keepdims=True), 1e-12)
    logits = (xn @ xn.T) / temperature
    lab = labels.reshape(-1, 1)
    mask = (lab == lab.T).astype(jnp.float32) - jnp.eye(x.shape[0],
                                                        dtype=jnp.float32)
    log_prob = jax.nn.log_softmax(logits, axis=1)
    mean_log_prob_pos = (mask * log_prob).sum(1) / mask.sum(1)
    return -mean_log_prob_pos.mean()


if __name__ == "__main__":
    key = jax.random.PRNGKey(0)
    N, D = 16, 32                      # batch of 16 embeddings, hidden=32
    kf, _ = jax.random.split(key)
    features = jax.random.normal(kf, (N, D), dtype=jnp.float32)
    # 4 classes x 4 samples each -> every sample has positives (avoids the
    # 0-positive NaN case, matching the PyTorch module's implicit assumption).
    labels = jnp.repeat(jnp.arange(4, dtype=jnp.int32), 4)

    loss = infonce_loss_pallas(features, labels, temperature=0.07)
    jax.block_until_ready(loss)

    ref = infonce_loss_ref(features, labels, temperature=0.07)
    assert jnp.allclose(loss, ref, rtol=1e-5, atol=1e-4), (loss, ref)

    print("KERNEL_OK")
</pallas_src>

<mosaic_0001>
module attributes {stable_mosaic.version = 11 : i64} {
  func.func @kernel(%arg0: i32, %arg1: i32, %arg2: memref<128x128xf32, #tpu.memory_space<vmem>>, %arg3: memref<128x128xf32, #tpu.memory_space<vmem>>, %arg4: memref<128x1xf32, #tpu.memory_space<vmem>>, %arg5: memref<128x1xi32, #tpu.memory_space<vmem>>, %arg6: memref<1x128xf32, #tpu.memory_space<vmem>>, %arg7: memref<1x128xi32, #tpu.memory_space<vmem>>, %arg8: memref<1x128xf32, #tpu.memory_space<vmem>>, %arg9: memref<128x1xf32, #tpu.memory_space<vmem>>, %arg10: memref<128x128xf32, #tpu.memory_space<vmem>>, %arg11: memref<128x1xf32, #tpu.memory_space<vmem>>, %arg12: memref<128x1xf32, #tpu.memory_space<vmem>>, %arg13: memref<128x1xf32, #tpu.memory_space<vmem>>, %arg14: memref<128x1xf32, #tpu.memory_space<vmem>>) attributes {dimension_semantics = [#tpu.dimension_semantics<parallel>, #tpu.dimension_semantics<arbitrary>], iteration_bounds = array<i64: 1, 1>, scalar_prefetch = 0 : i64, scratch_operands = 5 : i64, tpu.core_type = #tpu.core_type<tc>, window_params = [{transform_indices = @transform_0, window_bounds = array<i64: 128, 128>}, {transform_indices = @transform_1, window_bounds = array<i64: 128, 128>}, {transform_indices = @transform_2, window_bounds = array<i64: 128, 1>}, {transform_indices = @transform_3, window_bounds = array<i64: 128, 1>}, {transform_indices = @transform_4, window_bounds = array<i64: 1, 128>}, {transform_indices = @transform_5, window_bounds = array<i64: 1, 128>}, {transform_indices = @transform_6, window_bounds = array<i64: 1, 128>}, {transform_indices = @transform_7, window_bounds = array<i64: 128, 1>}]} {
    %c0_i32 = arith.constant 0 : i32
    %0 = arith.cmpi eq, %arg1, %c0_i32 : i32
    %1 = arith.extui %0 : i1 to i32
    %c0_i32_0 = arith.constant 0 : i32
    %2 = arith.cmpi ne, %1, %c0_i32_0 : i32
    scf.if %2 {
      %c0_34 = arith.constant 0 : index
      %c0_35 = arith.constant 0 : index
      %49 = vector.load %arg2[%c0_34, %c0_35] : memref<128x128xf32, #tpu.memory_space<vmem>>, vector<128x128xf32>
      %c0_36 = arith.constant 0 : index
      %c0_37 = arith.constant 0 : index
      %50 = vector.load %arg4[%c0_36, %c0_37] : memref<128x1xf32, #tpu.memory_space<vmem>>, vector<128x1xf32>
      %cst_38 = arith.constant 14.2857141 : f32
      %51 = vector.broadcast %cst_38 : f32 to vector<128x1xf32>
      %52 = arith.mulf %50, %51 : vector<128x1xf32>
      %53 = vector.broadcast %52 : vector<128x1xf32> to vector<128x128xf32>
      %54 = arith.mulf %49, %53 : vector<128x128xf32>
      %c0_39 = arith.constant 0 : index
      %c0_40 = arith.constant 0 : index
      %55 = vector.load %arg10[%c0_39, %c0_40] : memref<128x128xf32, #tpu.memory_space<vmem>>, vector<128x128xf32>
      tpu.vector_store %arg10[%c0_39, %c0_40], %54 {strides = array<i32>} : memref<128x128xf32, #tpu.memory_space<vmem>>, vector<128x128xf32>,
      %cst_41 = arith.constant -1.000000e+30 : f32
      %56 = vector.broadcast %cst_41 : f32 to vector<128x1xf32>
      %c0_42 = arith.constant 0 : index
      %c0_43 = arith.constant 0 : index
      %57 = vector.load %arg11[%c0_42, %c0_43] : memref<128x1xf32, #tpu.memory_space<vmem>>, vector<128x1xf32>
      tpu.vector_store %arg11[%c0_42, %c0_43], %56 {strides = array<i32>} : memref<128x1xf32, #tpu.memory_space<vmem>>, vector<128x1xf32>,
      %cst_44 = arith.constant 0.000000e+00 : f32
      %58 = vector.broadcast %cst_44 : f32 to vector<128x1xf32>
      %c0_45 = arith.constant 0 : index
      %c0_46 = arith.constant 0 : index
      %59 = vector.load %arg12[%c0_45, %c0_46] : memref<128x1xf32, #tpu.memory_space<vmem>>, vector<128x1xf32>
      tpu.vector_store %arg12[%c0_45, %c0_46], %58 {strides = array<i32>} : memref<128x1xf32, #tpu.memory_space<vmem>>, vector<128x1xf32>,
      %cst_47 = arith.constant 0.000000e+00 : f32
      %60 = vector.broadcast %cst_47 : f32 to vector<128x1xf32>
      %c0_48 = arith.constant 0 : index
      %c0_49 = arith.constant 0 : index
      %61 = vector.load %arg13[%c0_48, %c0_49] : memref<128x1xf32, #tpu.memory_space<vmem>>, vector<128x1xf32>
      tpu.vector_store %arg13[%c0_48, %c0_49], %60 {strides = array<i32>} : memref<128x1xf32, #tpu.memory_space<vmem>>, vector<128x1xf32>,
      %cst_50 = arith.constant 0.000000e+00 : f32
      %62 = vector.broadcast %cst_50 : f32 to vector<128x1xf32>
      %c0_51 = arith.constant 0 : index
      %c0_52 = arith.constant 0 : index
      %63 = vector.load %arg14[%c0_51, %c0_52] : memref<128x1xf32, #tpu.memory_space<vmem>>, vector<128x1xf32>
      tpu.vector_store %arg14[%c0_51, %c0_52], %62 {strides = array<i32>} : memref<128x1xf32, #tpu.memory_space<vmem>>, vector<128x1xf32>,
    } else {
    }
    %c0 = arith.constant 0 : index
    %c0_1 = arith.constant 0 : index
    %3 = vector.load %arg10[%c0, %c0_1] : memref<128x128xf32, #tpu.memory_space<vmem>>, vector<128x128xf32>
    %c0_2 = arith.constant 0 : index
    %c0_3 = arith.constant 0 : index
    %4 = vector.load %arg3[%c0_2, %c0_3] : memref<128x128xf32, #tpu.memory_space<vmem>>, vector<128x128xf32>
    %cst = arith.constant dense<0.000000e+00> : vector<128x128xf32>
    %5 = tpu.matmul %3, %4, %cst {dimension_numbers = #tpu.dot_dimension_numbers<[1], [1], [0], [0], [0, 0, 1, 0], [], []>} : vector<128x128xf32>, vector<128x128xf32>, vector<128x128xf32> -> vector<128x128xf32>
    %c0_4 = arith.constant 0 : index
    %c0_5 = arith.constant 0 : index
    %6 = vector.load %arg6[%c0_4, %c0_5] : memref<1x128xf32, #tpu.memory_space<vmem>>, vector<1x128xf32>
    %7 = vector.broadcast %6 : vector<1x128xf32> to vector<128x128xf32>
    %8 = arith.mulf %5, %7 : vector<128x128xf32>
    %c0_6 = arith.constant 0 : index
    %c0_7 = arith.constant 0 : index
    %9 = vector.load %arg8[%c0_6, %c0_7] : memref<1x128xf32, #tpu.memory_space<vmem>>, vector<1x128xf32>
    %10 = vector.broadcast %9 : vector<1x128xf32> to vector<128x128xf32>
    %11 = arith.addf %8, %10 : vector<128x128xf32>
    %c0_8 = arith.constant 0 : index
    %c0_9 = arith.constant 0 : index
    %12 = vector.load %arg5[%c0_8, %c0_9] : memref<128x1xi32, #tpu.memory_space<vmem>>, vector<128x1xi32>
    %c0_10 = arith.constant 0 : index
    %c0_11 = arith.constant 0 : index
    %13 = vector.load %arg7[%c0_10, %c0_11] : memref<1x128xi32, #tpu.memory_space<vmem>>, vector<1x128xi32>
    %14 = vector.broadcast %12 : vector<128x1xi32> to vector<128x128xi32>
    %15 = vector.broadcast %13 : vector<1x128xi32> to vector<128x128xi32>
    %16 = arith.cmpi eq, %14, %15 : vector<128x128xi32>
    %17 = arith.extui %16 : vector<128x128xi1> to vector<128x128xi32>
    %18 = arith.sitofp %17 : vector<128x128xi32> to vector<128x128xf32>
    %c0_12 = arith.constant 0 : index
    %c0_13 = arith.constant 0 : index
    %19 = vector.load %arg11[%c0_12, %c0_13] : memref<128x1xf32, #tpu.memory_space<vmem>>, vector<128x1xf32>
    %cst_14 = arith.constant dense<0xFF800000> : vector<128xf32>
    %20 = vector.multi_reduction <maximumf>, %11, %cst_14 [1] : vector<128x128xf32> to vector<128xf32>
    %21 = vector.shape_cast %20 : vector<128xf32> to vector<128x1xf32>
    %22 = arith.maximumf %19, %21 : vector<128x1xf32>
    %23 = arith.subf %19, %22 : vector<128x1xf32>
    %24 = math.exp %23 : vector<128x1xf32>
    %25 = vector.broadcast %22 : vector<128x1xf32> to vector<128x128xf32>
    %26 = arith.subf %11, %25 : vector<128x128xf32>
    %27 = math.exp %26 : vector<128x128xf32>
    %c0_15 = arith.constant 0 : index
    %c0_16 = arith.constant 0 : index
    %28 = vector.load %arg12[%c0_15, %c0_16] : memref<128x1xf32, #tpu.memory_space<vmem>>, vector<128x1xf32>
    %29 = arith.mulf %24, %28 : vector<128x1xf32>
    %cst_17 = arith.constant dense<0.000000e+00> : vector<128xf32>
    %30 = vector.multi_reduction <add>, %27, %cst_17 [1] : vector<128x128xf32> to vector<128xf32>
    %31 = vector.shape_cast %30 : vector<128xf32> to vector<128x1xf32>
    %32 = arith.addf %29, %31 : vector<128x1xf32>
    %c0_18 = arith.constant 0 : index
    %c0_19 = arith.constant 0 : index
    %33 = vector.load %arg12[%c0_18, %c0_19] : memref<128x1xf32, #tpu.memory_space<vmem>>, vector<128x1xf32>
    tpu.vector_store %arg12[%c0_18, %c0_19], %32 {strides = array<i32>} : memref<128x1xf32, #tpu.memory_space<vmem>>, vector<128x1xf32>,
    %c0_20 = arith.constant 0 : index
    %c0_21 = arith.constant 0 : index
    %34 = vector.load %arg11[%c0_20, %c0_21] : memref<128x1xf32, #tpu.memory_space<vmem>>, vector<128x1xf32>
    tpu.vector_store %arg11[%c0_20, %c0_21], %22 {strides = array<i32>} : memref<128x1xf32, #tpu.memory_space<vmem>>, vector<128x1xf32>,
    %c0_22 = arith.constant 0 : index
    %c0_23 = arith.constant 0 : index
    %35 = vector.load %arg13[%c0_22, %c0_23] : memref<128x1xf32, #tpu.memory_space<vmem>>, vector<128x1xf32>
    %36 = arith.mulf %18, %11 : vector<128x128xf32>
    %cst_24 = arith.constant dense<0.000000e+00> : vector<128xf32>
    %37 = vector.multi_reduction <add>, %36, %cst_24 [1] : vector<128x128xf32> to vector<128xf32>
    %38 = vector.shape_cast %37 : vector<128xf32> to vector<128x1xf32>
    %39 = arith.addf %35, %38 : vector<128x1xf32>
    %c0_25 = arith.constant 0 : index
    %c0_26 = arith.constant 0 : index
    %40 = vector.load %arg13[%c0_25, %c0_26] : memref<128x1xf32, #tpu.memory_space<vmem>>, vector<128x1xf32>
    tpu.vector_store %arg13[%c0_25, %c0_26], %39 {strides = array<i32>} : memref<128x1xf32, #tpu.memory_space<vmem>>, vector<128x1xf32>,
    %c0_27 = arith.constant 0 : index
    %c0_28 = arith.constant 0 : index
    %41 = vector.load %arg14[%c0_27, %c0_28] : memref<128x1xf32, #tpu.memory_space<vmem>>, vector<128x1xf32>
    %cst_29 = arith.constant dense<0.000000e+00> : vector<128xf32>
    %42 = vector.multi_reduction <add>, %18, %cst_29 [1] : vector<128x128xf32> to vector<128xf32>
    %43 = vector.shape_cast %42 : vector<128xf32> to vector<128x1xf32>
    %44 = arith.addf %41, %43 : vector<128x1xf32>
    %c0_30 = arith.constant 0 : index
    %c0_31 = arith.constant 0 : index
    %45 = vector.load %arg14[%c0_30, %c0_31] : memref<128x1xf32, #tpu.memory_space<vmem>>, vector<128x1xf32>
    tpu.vector_store %arg14[%c0_30, %c0_31], %44 {strides = array<i32>} : memref<128x1xf32, #tpu.memory_space<vmem>>, vector<128x1xf32>,
    %c0_i32_32 = arith.constant 0 : i32
    %46 = arith.cmpi eq, %arg1, %c0_i32_32 : i32
    %47 = arith.extui %46 : i1 to i32
    %c0_i32_33 = arith.constant 0 : i32
    %48 = arith.cmpi ne, %47, %c0_i32_33 : i32
    scf.if %48 {
      %c0_34 = arith.constant 0 : index
      %c0_35 = arith.constant 0 : index
      %49 = vector.load %arg11[%c0_34, %c0_35] : memref<128x1xf32, #tpu.memory_space<vmem>>, vector<128x1xf32>
      %c0_36 = arith.constant 0 : index
      %c0_37 = arith.constant 0 : index
      %50 = vector.load %arg12[%c0_36, %c0_37] : memref<128x1xf32, #tpu.memory_space<vmem>>, vector<128x1xf32>
      %51 = math.log %50 : vector<128x1xf32>
      %52 = arith.addf %49, %51 : vector<128x1xf32>
      %c0_38 = arith.constant 0 : index
      %c0_39 = arith.constant 0 : index
      %53 = vector.load %arg14[%c0_38, %c0_39] : memref<128x1xf32, #tpu.memory_space<vmem>>, vector<128x1xf32>
      %cst_40 = arith.constant 1.000000e+00 : f32
      %54 = vector.broadcast %cst_40 : f32 to vector<128x1xf32>
      %55 = arith.subf %53, %54 : vector<128x1xf32>
      %c0_41 = arith.constant 0 : index
      %c0_42 = arith.constant 0 : index
      %56 = vector.load %arg13[%c0_41, %c0_42] : memref<128x1xf32, #tpu.memory_space<vmem>>, vector<128x1xf32>
      %cst_43 = arith.constant 14.2857141 : f32
      %57 = vector.broadcast %cst_43 : f32 to vector<128x1xf32>
      %58 = arith.subf %56, %57 : vector<128x1xf32>
      %59 = arith.mulf %55, %52 : vector<128x1xf32>
      %60 = arith.subf %58, %59 : vector<128x1xf32>
      %61 = arith.divf %60, %55 : vector<128x1xf32>
      %c0_44 = arith.constant 0 : index
      %c0_45 = arith.constant 0 : index
      %62 = vector.load %arg9[%c0_44, %c0_45] : memref<128x1xf32, #tpu.memory_space<vmem>>, vector<128x1xf32>
      tpu.vector_store %arg9[%c0_44, %c0_45], %61 {strides = array<i32>} : memref<128x1xf32, #tpu.memory_space<vmem>>, vector<128x1xf32>,
    } else {
    }
    return
  }
  func.func @transform_0(%arg0: i32, %arg1: i32) -> (i32, i32) {
    %c0_i32 = arith.constant 0 : i32
    %c0_i32_0 = arith.constant 0 : i32
    return %arg0, %c0_i32 : i32, i32
  }
  func.func @transform_1(%arg0: i32, %arg1: i32) -> (i32, i32) {
    %c0_i32 = arith.constant 0 : i32
    %c0_i32_0 = arith.constant 0 : i32
    return %arg1, %c0_i32 : i32, i32
  }
  func.func @transform_2(%arg0: i32, %arg1: i32) -> (i32, i32) {
    %c0_i32 = arith.constant 0 : i32
    %c0_i32_0 = arith.constant 0 : i32
    return %arg0, %c0_i32 : i32, i32
  }
  func.func @transform_3(%arg0: i32, %arg1: i32) -> (i32, i32) {
    %c0_i32 = arith.constant 0 : i32
    %c0_i32_0 = arith.constant 0 : i32
    return %arg0, %c0_i32 : i32, i32
  }
  func.func @transform_4(%arg0: i32, %arg1: i32) -> (i32, i32) {
    %c0_i32 = arith.constant 0 : i32
    %c0_i32_0 = arith.constant 0 : i32
    return %c0_i32, %arg1 : i32, i32
  }
  func.func @transform_5(%arg0: i32, %arg1: i32) -> (i32, i32) {
    %c0_i32 = arith.constant 0 : i32
    %c0_i32_0 = arith.constant 0 : i32
    return %c0_i32, %arg1 : i32, i32
  }
  func.func @transform_6(%arg0: i32, %arg1: i32) -> (i32, i32) {
    %c0_i32 = arith.constant 0 : i32
    %c0_i32_0 = arith.constant 0 : i32
    return %c0_i32, %arg1 : i32, i32
  }
  func.func @transform_7(%arg0: i32, %arg1: i32) -> (i32, i32) {
    %c0_i32 = arith.constant 0 : i32
    %c0_i32_0 = arith.constant 0 : i32
    return %arg0, %c0_i32 : i32, i32
  }
}

</mosaic_0001>

<llo_original>
// kernel: tpu_custom_call.1
$region0: #{tpu_custom_call.1}
  #allocation0 [shape = 'u32[]', space=smem, size = 0x4, offset = 0x4, fixed_abs, tag = 'smem constant byte address 0x4 - core index']
  #allocation1 [shape = 'u32[144,128]{1,0:T(1,128)}', space=vmem, size = 0x12000, scoped, tag = 'internal scratch']
  #allocation2 [shape = 'f32[128,128]{1,0:T(8,128)}', space=vmem, size = 0x10000, scoped, tag = 'scratch operand']
  #allocation3 [shape = 'f32[128,1]{1,0:T(8,128)}', space=vmem, size = 0x10000, scoped, tag = 'scratch operand']
  #allocation4 [shape = 'f32[128,1]{1,0:T(8,128)}', space=vmem, size = 0x10000, scoped, tag = 'scratch operand']
  #allocation5 [shape = 'f32[128,1]{1,0:T(8,128)}', space=vmem, size = 0x10000, scoped, tag = 'scratch operand']
  #allocation6 [shape = 'f32[128,1]{1,0:T(8,128)}', space=vmem, size = 0x10000, scoped, tag = 'scratch operand']
  %s0 = inlined_call_operand.vmem [shape: f32[128,128], index: 0, kind: input, shape index: {}]
  %s1 = inlined_call_operand.vmem [shape: f32[128,128], index: 1, kind: input, shape index: {}]
  %s2 = inlined_call_operand.vmem [shape: f32[128,1], index: 2, kind: input, shape index: {}]
  %s3 = inlined_call_operand.vmem [shape: s32[128,1], index: 3, kind: input, shape index: {}]
  %s4 = inlined_call_operand.vmem [shape: f32[1,128], index: 4, kind: input, shape index: {}]
  %s5 = inlined_call_operand.vmem [shape: s32[1,128], index: 5, kind: input, shape index: {}]
  %s6 = inlined_call_operand.vmem [shape: f32[1,128], index: 6, kind: input, shape index: {}]
  %s7 = inlined_call_operand.vmem [shape: f32[128,1], index: 7, kind: output, shape index: {}]
  %s8 = sld [smem:[#allocation0]]
  $region46: #{tpu_custom_call.1} parent=0
    _
  %s10 = ssub.s32 1, %s8
  %s11 = scalar_select 0, %s10, %s8
  // Predicated region
  $region2: #{tpu_custom_call.1} parent=0 // pred_check
    _
  $region3: #{tpu_custom_call.1} parent=0 // pred_check_branch
    %13 = sbr.rel (0) target = $region5
  $region4: #{tpu_custom_call.1} parent=0 // pred_region
    _
  $region5: #{tpu_custom_call.1} parent=0 // pred_fallthru
    _
  // Predicated region
  $region6: #{tpu_custom_call.1} parent=0 // pred_check
    _
  $region7: #{tpu_custom_call.1} parent=0 // pred_check_branch
    %15 = sbr.rel (0) target = $region9
  $region8: #{tpu_custom_call.1} parent=0 // pred_region
    _
  $region9: #{tpu_custom_call.1} parent=0 // pred_fallthru
    _
  // Predicated region
  $region10: #{tpu_custom_call.1} parent=0 // pred_check
    _
  $region11: #{tpu_custom_call.1} parent=0 // pred_check_branch
    %17 = sbr.rel (0) target = $region13
  $region12: #{tpu_custom_call.1} parent=0 // pred_region
    _
  $region13: #{tpu_custom_call.1} parent=0 // pred_fallthru
    _
  // Predicated region
  $region14: #{tpu_custom_call.1} parent=0 // pred_check
    _
  $region15: #{tpu_custom_call.1} parent=0 // pred_check_branch
    %19 = sbr.rel (0) target = $region17
  $region16: #{tpu_custom_call.1} parent=0 // pred_region
    _
  $region17: #{tpu_custom_call.1} parent=0 // pred_fallthru
    _
  // Predicated region
  $region18: #{tpu_custom_call.1} parent=0 // pred_check
    _
  $region19: #{tpu_custom_call.1} parent=0 // pred_check_branch
    %21 = sbr.rel (0) target = $region21
  $region20: #{tpu_custom_call.1} parent=0 // pred_region
    _
  $region21: #{tpu_custom_call.1} parent=0 // pred_fallthru
    _
  // Predicated region
  $region22: #{tpu_custom_call.1} parent=0 // pred_check
    _
  $region23: #{tpu_custom_call.1} parent=0 // pred_check_branch
    %23 = sbr.rel (0) target = $region25
  $region24: #{tpu_custom_call.1} parent=0 // pred_region
    _
  $region25: #{tpu_custom_call.1} parent=0 // pred_fallthru
    _
  // Predicated region
  $region26: #{tpu_custom_call.1} parent=0 // pred_check
    _
  $region27: #{tpu_custom_call.1} parent=0 // pred_check_branch
    %25 = sbr.rel (0) target = $region29
  $region28: #{tpu_custom_call.1} parent=0 // pred_region
    _
  $region29: #{tpu_custom_call.1} parent=0 // pred_fallthru
    _
  %p26 = scmp.eq.s32.totalorder 0, 0
  // Predicated region
  $region30: #{tpu_custom_call.1} parent=0 // pred_check
    %p27 = pneg %p26
  $region31: #{tpu_custom_call.1} parent=0 // pred_check_branch
    %29 = sbr.rel (%p27) target = $region33
  $region32: #{tpu_custom_call.1} parent=0 // pred_region
    %v30 = vld [vmem:[%s0] sm:$0xff]
    %v31 = vld [vmem:[%s0 + $0x8] sm:$0xff]
    %v32 = vld [vmem:[%s0 + $0x10] sm:$0xff]
    %v33 = vld [vmem:[%s0 + $0x18] sm:$0xff]
    %v34 = vld [vmem:[%s0 + $0x20] sm:$0xff]
    %v35 = vld [vmem:[%s0 + $0x28] sm:$0xff]
    %v36 = vld [vmem:[%s0 + $0x30] sm:$0xff]
    %v37 = vld [vmem:[%s0 + $0x38] sm:$0xff]
    %v38 = vld [vmem:[%s0 + $0x40] sm:$0xff]
    %v39 = vld [vmem:[%s0 + $0x48] sm:$0xff]
    %v40 = vld [vmem:[%s0 + $0x50] sm:$0xff]
    %v41 = vld [vmem:[%s0 + $0x58] sm:$0xff]
    %v42 = vld [vmem:[%s0 + $0x60] sm:$0xff]
    %v43 = vld [vmem:[%s0 + $0x68] sm:$0xff]
    %v44 = vld [vmem:[%s0 + $0x70] sm:$0xff]
    %v45 = vld [vmem:[%s0 + $0x78] sm:$0xff]
    %v46 = vld [vmem:[%s2] sm:$0xff]
    %v47 = vld [vmem:[%s2 + $0x8] sm:$0xff]
    %v48 = vld [vmem:[%s2 + $0x10] sm:$0xff]
    %v49 = vld [vmem:[%s2 + $0x18] sm:$0xff]
    %v50 = vld [vmem:[%s2 + $0x20] sm:$0xff]
    %v51 = vld [vmem:[%s2 + $0x28] sm:$0xff]
    %v52 = vld [vmem:[%s2 + $0x30] sm:$0xff]
    %v53 = vld [vmem:[%s2 + $0x38] sm:$0xff]
    %v54 = vld [vmem:[%s2 + $0x40] sm:$0xff]
    %v55 = vld [vmem:[%s2 + $0x48] sm:$0xff]
    %v56 = vld [vmem:[%s2 + $0x50] sm:$0xff]
    %v57 = vld [vmem:[%s2 + $0x58] sm:$0xff]
    %v58 = vld [vmem:[%s2 + $0x60] sm:$0xff]
    %v59 = vld [vmem:[%s2 + $0x68] sm:$0xff]
    %v60 = vld [vmem:[%s2 + $0x70] sm:$0xff]
    %v61 = vld [vmem:[%s2 + $0x78] sm:$0xff]
    %v62 = vmul.f32 %v46, 14.285714
    %v63 = vmul.f32 %v47, 14.285714
    %v64 = vmul.f32 %v48, 14.285714
    %v65 = vmul.f32 %v49, 14.285714
    %v66 = vmul.f32 %v50, 14.285714
    %v67 = vmul.f32 %v51, 14.285714
    %v68 = vmul.f32 %v52, 14.285714
    %v69 = vmul.f32 %v53, 14.285714
    %v70 = vmul.f32 %v54, 14.285714
    %v71 = vmul.f32 %v55, 14.285714
    %v72 = vmul.f32 %v56, 14.285714
    %v73 = vmul.f32 %v57, 14.285714
    %v74 = vmul.f32 %v58, 14.285714
    %v75 = vmul.f32 %v59, 14.285714
    %v76 = vmul.f32 %v60, 14.285714
    %v77 = vmul.f32 %v61, 14.285714
    %79 = vset.pattern.permute.xlu0 0
    %80 = vperm.xlu0 %79, %v62
    %v81 = vpop.permute.xlu0 %80
    %84 = vset.pattern.permute.xlu0 0
    %85 = vperm.xlu0 %84, %v63
    %v86 = vpop.permute.xlu0 %85
    %89 = vset.pattern.permute.xlu0 0
    %90 = vperm.xlu0 %89, %v64
    %v91 = vpop.permute.xlu0 %90
    %94 = vset.pattern.permute.xlu0 0
    %95 = vperm.xlu0 %94, %v65
    %v96 = vpop.permute.xlu0 %95
    %99 = vset.pattern.permute.xlu0 0
    %100 = vperm.xlu0 %99, %v66
    %v101 = vpop.permute.xlu0 %100
    %104 = vset.pattern.permute.xlu0 0
    %105 = vperm.xlu0 %104, %v67
    %v106 = vpop.permute.xlu0 %105
    %109 = vset.pattern.permute.xlu0 0
    %110 = vperm.xlu0 %109, %v68
    %v111 = vpop.permute.xlu0 %110
    %114 = vset.pattern.permute.xlu0 0
    %115 = vperm.xlu0 %114, %v69
    %v116 = vpop.permute.xlu0 %115
    %119 = vset.pattern.permute.xlu0 0
    %120 = vperm.xlu0 %119, %v70
    %v121 = vpop.permute.xlu0 %120
    %124 = vset.pattern.permute.xlu0 0
    %125 = vperm.xlu0 %124, %v71
    %v126 = vpop.permute.xlu0 %125
    %129 = vset.pattern.permute.xlu0 0
    %130 = vperm.xlu0 %129, %v72
    %v131 = vpop.permute.xlu0 %130
    %134 = vset.pattern.permute.xlu0 0
    %135 = vperm.xlu0 %134, %v73
    %v136 = vpop.permute.xlu0 %135
    %139 = vset.pattern.permute.xlu0 0
    %140 = vperm.xlu0 %139, %v74
    %v141 = vpop.permute.xlu0 %140
    %144 = vset.pattern.permute.xlu0 0
    %145 = vperm.xlu0 %144, %v75
    %v146 = vpop.permute.xlu0 %145
    %149 = vset.pattern.permute.xlu0 0
    %150 = vperm.xlu0 %149, %v76
    %v151 = vpop.permute.xlu0 %150
    %154 = vset.pattern.permute.xlu0 0
    %155 = vperm.xlu0 %154, %v77
    %v156 = vpop.permute.xlu0 %155
    %v158 = vmul.f32 %v30, %v81
    %v159 = vmul.f32 %v31, %v86
    %v160 = vmul.f32 %v32, %v91
    %v161 = vmul.f32 %v33, %v96
    %v162 = vmul.f32 %v34, %v101
    %v163 = vmul.f32 %v35, %v106
    %v164 = vmul.f32 %v36, %v111
    %v165 = vmul.f32 %v37, %v116
    %v166 = vmul.f32 %v38, %v121
    %v167 = vmul.f32 %v39, %v126
    %v168 = vmul.f32 %v40, %v131
    %v169 = vmul.f32 %v41, %v136
    %v170 = vmul.f32 %v42, %v141
    %v171 = vmul.f32 %v43, %v146
    %v172 = vmul.f32 %v44, %v151
    %v173 = vmul.f32 %v45, %v156
    %174 = vst [vmem:[#allocation2] sm:$0xff] %v158
    %175 = vst [vmem:[#allocation2 + $0x8] sm:$0xff] %v159
    %176 = vst [vmem:[#allocation2 + $0x10] sm:$0xff] %v160
    %177 = vst [vmem:[#allocation2 + $0x18] sm:$0xff] %v161
    %178 = vst [vmem:[#allocation2 + $0x20] sm:$0xff] %v162
    %179 = vst [vmem:[#allocation2 + $0x28] sm:$0xff] %v163
    %180 = vst [vmem:[#allocation2 + $0x30] sm:$0xff] %v164
    %181 = vst [vmem:[#allocation2 + $0x38] sm:$0xff] %v165
    %182 = vst [vmem:[#allocation2 + $0x40] sm:$0xff] %v166
    %183 = vst [vmem:[#allocation2 + $0x48] sm:$0xff] %v167
    %184 = vst [vmem:[#allocation2 + $0x50] sm:$0xff] %v168
    %185 = vst [vmem:[#allocation2 + $0x58] sm:$0xff] %v169
    %186 = vst [vmem:[#allocation2 + $0x60] sm:$0xff] %v170
    %187 = vst [vmem:[#allocation2 + $0x68] sm:$0xff] %v171
    %188 = vst [vmem:[#allocation2 + $0x70] sm:$0xff] %v172
    %189 = vst [vmem:[#allocation2 + $0x78] sm:$0xff] %v173
    %vm190 = vcmask 7168
    %191 = vst.msk [vmem:[#allocation3] sm:$0xff] %vm190, -1e+30
    %192 = vst.msk [vmem:[#allocation3 + $0x8] sm:$0xff] %vm190, -1e+30
    %193 = vst.msk [vmem:[#allocation3 + $0x10] sm:$0xff] %vm190, -1e+30
    %194 = vst.msk [vmem:[#allocation3 + $0x18] sm:$0xff] %vm190, -1e+30
    %195 = vst.msk [vmem:[#allocation3 + $0x20] sm:$0xff] %vm190, -1e+30
    %196 = vst.msk [vmem:[#allocation3 + $0x28] sm:$0xff] %vm190, -1e+30
    %197 = vst.msk [vmem:[#allocation3 + $0x30] sm:$0xff] %vm190, -1e+30
    %198 = vst.msk [vmem:[#allocation3 + $0x38] sm:$0xff] %vm190, -1e+30
    %199 = vst.msk [vmem:[#allocation3 + $0x40] sm:$0xff] %vm190, -1e+30
    %200 = vst.msk [vmem:[#allocation3 + $0x48] sm:$0xff] %vm190, -1e+30
    %201 = vst.msk [vmem:[#allocation3 + $0x50] sm:$0xff] %vm190, -1e+30
    %202 = vst.msk [vmem:[#allocation3 + $0x58] sm:$0xff] %vm190, -1e+30
    %203 = vst.msk [vmem:[#allocation3 + $0x60] sm:$0xff] %vm190, -1e+30
    %204 = vst.msk [vmem:[#allocation3 + $0x68] sm:$0xff] %vm190, -1e+30
    %205 = vst.msk [vmem:[#allocation3 + $0x70] sm:$0xff] %vm190, -1e+30
    %206 = vst.msk [vmem:[#allocation3 + $0x78] sm:$0xff] %vm190, -1e+30
    %207 = vst.msk [vmem:[#allocation4] sm:$0xff] %vm190, 0.0
    %208 = vst.msk [vmem:[#allocation4 + $0x8] sm:$0xff] %vm190, 0.0
    %209 = vst.msk [vmem:[#allocation4 + $0x10] sm:$0xff] %vm190, 0.0
    %210 = vst.msk [vmem:[#allocation4 + $0x18] sm:$0xff] %vm190, 0.0
    %211 = vst.msk [vmem:[#allocation4 + $0x20] sm:$0xff] %vm190, 0.0
    %212 = vst.msk [vmem:[#allocation4 + $0x28] sm:$0xff] %vm190, 0.0
    %213 = vst.msk [vmem:[#allocation4 + $0x30] sm:$0xff] %vm190, 0.0
    %214 = vst.msk [vmem:[#allocation4 + $0x38] sm:$0xff] %vm190, 0.0
    %215 = vst.msk [vmem:[#allocation4 + $0x40] sm:$0xff] %vm190, 0.0
    %216 = vst.msk [vmem:[#allocation4 + $0x48] sm:$0xff] %vm190, 0.0
    %217 = vst.msk [vmem:[#allocation4 + $0x50] sm:$0xff] %vm190, 0.0
    %218 = vst.msk [vmem:[#allocation4 + $0x58] sm:$0xff] %vm190, 0.0
    %219 = vst.msk [vmem:[#allocation4 + $0x60] sm:$0xff] %vm190, 0.0
    %220 = vst.msk [vmem:[#allocation4 + $0x68] sm:$0xff] %vm190, 0.0
    %221 = vst.msk [vmem:[#allocation4 + $0x70] sm:$0xff] %vm190, 0.0
    %222 = vst.msk [vmem:[#allocation4 + $0x78] sm:$0xff] %vm190, 0.0
    %223 = vst.msk [vmem:[#allocation5] sm:$0xff] %vm190, 0.0
    %224 = vst.msk [vmem:[#allocation5 + $0x8] sm:$0xff] %vm190, 0.0
    %225 = vst.msk [vmem:[#allocation5 + $0x10] sm:$0xff] %vm190, 0.0
    %226 = vst.msk [vmem:[#allocation5 + $0x18] sm:$0xff] %vm190, 0.0
    %227 = vst.msk [vmem:[#allocation5 + $0x20] sm:$0xff] %vm190, 0.0
    %228 = vst.msk [vmem:[#allocation5 + $0x28] sm:$0xff] %vm190, 0.0
    %229 = vst.msk [vmem:[#allocation5 + $0x30] sm:$0xff] %vm190, 0.0
    %230 = vst.msk [vmem:[#allocation5 + $0x38] sm:$0xff] %vm190, 0.0
    %231 = vst.msk [vmem:[#allocation5 + $0x40] sm:$0xff] %vm190, 0.0
    %232 = vst.msk [vmem:[#allocation5 + $0x48] sm:$0xff] %vm190, 0.0
    %233 = vst.msk [vmem:[#allocation5 + $0x50] sm:$0xff] %vm190, 0.0
    %234 = vst.msk [vmem:[#allocation5 + $0x58] sm:$0xff] %vm190, 0.0
    %235 = vst.msk [vmem:[#allocation5 + $0x60] sm:$0xff] %vm190, 0.0
    %236 = vst.msk [vmem:[#allocation5 + $0x68] sm:$0xff] %vm190, 0.0
    %237 = vst.msk [vmem:[#allocation5 + $0x70] sm:$0xff] %vm190, 0.0
    %238 = vst.msk [vmem:[#allocation5 + $0x78] sm:$0xff] %vm190, 0.0
    %239 = vst.msk [vmem:[#allocation6] sm:$0xff] %vm190, 0.0
    %240 = vst.msk [vmem:[#allocation6 + $0x8] sm:$0xff] %vm190, 0.0
    %241 = vst.msk [vmem:[#allocation6 + $0x10] sm:$0xff] %vm190, 0.0
    %242 = vst.msk [vmem:[#allocation6 + $0x18] sm:$0xff] %vm190, 0.0
    %243 = vst.msk [vmem:[#allocation6 + $0x20] sm:$0xff] %vm190, 0.0
    %244 = vst.msk [vmem:[#allocation6 + $0x28] sm:$0xff] %vm190, 0.0
    %245 = vst.msk [vmem:[#allocation6 + $0x30] sm:$0xff] %vm190, 0.0
    %246 = vst.msk [vmem:[#allocation6 + $0x38] sm:$0xff] %vm190, 0.0
    %247 = vst.msk [vmem:[#allocation6 + $0x40] sm:$0xff] %vm190, 0.0
    %248 = vst.msk [vmem:[#allocation6 + $0x48] sm:$0xff] %vm190, 0.0
    %249 = vst.msk [vmem:[#allocation6 + $0x50] sm:$0xff] %vm190, 0.0
    %250 = vst.msk [vmem:[#allocation6 + $0x58] sm:$0xff] %vm190, 0.0
    %251 = vst.msk [vmem:[#allocation6 + $0x60] sm:$0xff] %vm190, 0.0
    %252 = vst.msk [vmem:[#allocation6 + $0x68] sm:$0xff] %vm190, 0.0
    %253 = vst.msk [vmem:[#allocation6 + $0x70] sm:$0xff] %vm190, 0.0
    %254 = vst.msk [vmem:[#allocation6 + $0x78] sm:$0xff] %vm190, 0.0
  $region33: #{tpu_custom_call.1} parent=0 // pred_fallthru
    _
  %v255 = vld [vmem:[#allocation2] sm:$0xff]
  %v256 = vld [vmem:[#allocation2 + $0x8] sm:$0xff]
  %v257 = vld [vmem:[#allocation2 + $0x10] sm:$0xff]
  %v258 = vld [vmem:[#allocation2 + $0x18] sm:$0xff]
  %v259 = vld [vmem:[#allocation2 + $0x20] sm:$0xff]
  %v260 = vld [vmem:[#allocation2 + $0x28] sm:$0xff]
  %v261 = vld [vmem:[#allocation2 + $0x30] sm:$0xff]
  %v262 = vld [vmem:[#allocation2 + $0x38] sm:$0xff]
  %v263 = vld [vmem:[#allocation2 + $0x40] sm:$0xff]
  %v264 = vld [vmem:[#allocation2 + $0x48] sm:$0xff]
  %v265 = vld [vmem:[#allocation2 + $0x50] sm:$0xff]
  %v266 = vld [vmem:[#allocation2 + $0x58] sm:$0xff]
  %v267 = vld [vmem:[#allocation2 + $0x60] sm:$0xff]
  %v268 = vld [vmem:[#allocation2 + $0x68] sm:$0xff]
  %v269 = vld [vmem:[#allocation2 + $0x70] sm:$0xff]
  %v270 = vld [vmem:[#allocation2 + $0x78] sm:$0xff]
  %v271 = vld [vmem:[%s1] sm:$0xff]
  %v272 = vld [vmem:[%s1 + $0x8] sm:$0xff]
  %v273 = vld [vmem:[%s1 + $0x10] sm:$0xff]
  %v274 = vld [vmem:[%s1 + $0x18] sm:$0xff]
  %v275 = vld [vmem:[%s1 + $0x20] sm:$0xff]
  %v276 = vld [vmem:[%s1 + $0x28] sm:$0xff]
  %v277 = vld [vmem:[%s1 + $0x30] sm:$0xff]
  %v278 = vld [vmem:[%s1 + $0x38] sm:$0xff]
  %v279 = vld [vmem:[%s1 + $0x40] sm:$0xff]
  %v280 = vld [vmem:[%s1 + $0x48] sm:$0xff]
  %v281 = vld [vmem:[%s1 + $0x50] sm:$0xff]
  %v282 = vld [vmem:[%s1 + $0x58] sm:$0xff]
  %v283 = vld [vmem:[%s1 + $0x60] sm:$0xff]
  %v284 = vld [vmem:[%s1 + $0x68] sm:$0xff]
  %v285 = vld [vmem:[%s1 + $0x70] sm:$0xff]
  %v286 = vld [vmem:[%s1 + $0x78] sm:$0xff]
  %287 = vmatprep.subr.mxu0 0.0
  %288 = vmatpush1.xpose.msra.mxu0 %v271
  %289 = vmatprep.subr.mxu0 0.0
  %290 = vmatpush1.xpose.msra.mxu0 %v272
  %291 = vmatprep.subr.mxu0 0.0
  %292 = vmatpush1.xpose.msra.mxu0 %v273
  %293 = vmatprep.subr.mxu0 0.0
  %294 = vmatpush1.xpose.msra.mxu0 %v274
  %295 = vmatprep.subr.mxu0 0.0
  %296 = vmatpush1.xpose.msra.mxu0 %v275
  %297 = vmatprep.subr.mxu0 0.0
  %298 = vmatpush1.xpose.msra.mxu0 %v276
  %299 = vmatprep.subr.mxu0 0.0
  %300 = vmatpush1.xpose.msra.mxu0 %v277
  %301 = vmatprep.subr.mxu0 0.0
  %302 = vmatpush1.xpose.msra.mxu0 %v278
  %303 = vmatprep.subr.mxu0 0.0
  %304 = vmatpush1.xpose.msra.mxu0 %v279
  %305 = vmatprep.subr.mxu0 0.0
  %306 = vmatpush1.xpose.msra.mxu0 %v280
  %307 = vmatprep.subr.mxu0 0.0
  %308 = vmatpush1.xpose.msra.mxu0 %v281
  %309 = vmatprep.subr.mxu0 0.0
  %310 = vmatpush1.xpose.msra.mxu0 %v282
  %311 = vmatprep.subr.mxu0 0.0
  %312 = vmatpush1.xpose.msra.mxu0 %v283
  %313 = vmatprep.subr.mxu0 0.0
  %314 = vmatpush1.xpose.msra.mxu0 %v284
  %315 = vmatprep.subr.mxu0 0.0
  %316 = vmatpush1.xpose.msra.mxu0 %v285
  %317 = vmatprep.subr.mxu0 0.0
  %318 = vmatpush1.xpose.msra.mxu0 %v286
  %319 = vmatprep.subr.mxu0 0.0
  %320 = vmatpush1.xpose.msra.mxu0 0.0
  %321 = vmatprep.subr.mxu0 0.0
  %322 = vmatpush1.xpose.msra.mxu0 0.0
  %323 = vmatprep.subr.mxu0 0.0
  %324 = vmatpush1.xpose.msra.mxu0 0.0
  %325 = vmatprep.subr.mxu0 0.0
  %326 = vmatpush1.xpose.msra.mxu0 0.0
  %327 = vmatprep.subr.mxu0 0.0
  %328 = vmatpush1.xpose.msra.mxu0 0.0
  %329 = vmatprep.subr.mxu0 0.0
  %330 = vmatpush1.xpose.msra.mxu0 0.0
  %331 = vmatprep.subr.mxu0 0.0
  %332 = vmatpush1.xpose.msra.mxu0 0.0
  %333 = vmatprep.subr.mxu0 0.0
  %334 = vmatpush1.xpose.msra.mxu0 0.0
  %335 = vmatprep.subr.mxu0 0.0
  %336 = vmatpush1.xpose.msra.mxu0 0.0
  %337 = vmatprep.subr.mxu0 0.0
  %338 = vmatpush1.xpose.msra.mxu0 0.0
  %339 = vmatprep.subr.mxu0 0.0
  %340 = vmatpush1.xpose.msra.mxu0 0.0
  %341 = vmatprep.subr.mxu0 0.0
  %342 = vmatpush1.xpose.msra.mxu0 0.0
  %343 = vmatprep.subr.mxu0 0.0
  %344 = vmatpush1.xpose.msra.mxu0 0.0
  %345 = vmatprep.subr.mxu0 0.0
  %346 = vmatpush1.xpose.msra.mxu0 0.0
  %347 = vmatprep.subr.mxu0 0.0
  %348 = vmatpush1.xpose.msra.mxu0 0.0
  %349 = vmatprep.subr.mxu0 0.0
  %350 = vmatpush1.xpose.msra.mxu0 0.0
  %351 = vmatprep.mubr.f32.mxu0 0.0
  %352 = vmatmul.mubr.f32.gmra.mrb[0].mxu0 %v255
  %v353 = vpop.f32.mrb[0].mxu0
  %v354 = vadd.f32 0.0, %v353
  %v355 = vpop.f32.mrb[0].mxu0
  %356 = vmatprep.mubr.f32.mxu0 0.0
  %357 = vmatmul.mubr.f32.gmra.mrb[0].mxu0 %v256
  %v358 = vpop.f32.mrb[0].mxu0
  %v359 = vadd.f32 0.0, %v358
  %v360 = vpop.f32.mrb[0].mxu0
  %361 = vmatprep.mubr.f32.mxu0 0.0
  %362 = vmatmul.mubr.f32.gmra.mrb[0].mxu0 %v257
  %v363 = vpop.f32.mrb[0].mxu0
  %v364 = vadd.f32 0.0, %v363
  %v365 = vpop.f32.mrb[0].mxu0
  %366 = vmatprep.mubr.f32.mxu0 0.0
  %367 = vmatmul.mubr.f32.gmra.mrb[0].mxu0 %v258
  %v368 = vpop.f32.mrb[0].mxu0
  %v369 = vadd.f32 0.0, %v368
  %v370 = vpop.f32.mrb[0].mxu0
  %371 = vmatprep.mubr.f32.mxu0 0.0
  %372 = vmatmul.mubr.f32.gmra.mrb[0].mxu0 %v259
  %v373 = vpop.f32.mrb[0].mxu0
  %v374 = vadd.f32 0.0, %v373
  %v375 = vpop.f32.mrb[0].mxu0
  %376 = vmatprep.mubr.f32.mxu0 0.0
  %377 = vmatmul.mubr.f32.gmra.mrb[0].mxu0 %v260
  %v378 = vpop.f32.mrb[0].mxu0
  %v379 = vadd.f32 0.0, %v378
  %v380 = vpop.f32.mrb[0].mxu0
  %381 = vmatprep.mubr.f32.mxu0 0.0
  %382 = vmatmul.mubr.f32.gmra.mrb[0].mxu0 %v261
  %v383 = vpop.f32.mrb[0].mxu0
  %v384 = vadd.f32 0.0, %v383
  %v385 = vpop.f32.mrb[0].mxu0
  %386 = vmatprep.mubr.f32.mxu0 0.0
  %387 = vmatmul.mubr.f32.gmra.mrb[0].mxu0 %v262
  %v388 = vpop.f32.mrb[0].mxu0
  %v389 = vadd.f32 0.0, %v388
  %v390 = vpop.f32.mrb[0].mxu0
  %391 = vmatprep.mubr.f32.mxu0 0.0
  %392 = vmatmul.mubr.f32.gmra.mrb[0].mxu0 %v263
  %v393 = vpop.f32.mrb[0].mxu0
  %v394 = vadd.f32 0.0, %v393
  %v395 = vpop.f32.mrb[0].mxu0
  %396 = vmatprep.mubr.f32.mxu0 0.0
  %397 = vmatmul.mubr.f32.gmra.mrb[0].mxu0 %v264
  %v398 = vpop.f32.mrb[0].mxu0
  %v399 = vadd.f32 0.0, %v398
  %v400 = vpop.f32.mrb[0].mxu0
  %401 = vmatprep.mubr.f32.mxu0 0.0
  %402 = vmatmul.mubr.f32.gmra.mrb[0].mxu0 %v265
  %v403 = vpop.f32.mrb[0].mxu0
  %v404 = vadd.f32 0.0, %v403
  %v405 = vpop.f32.mrb[0].mxu0
  %406 = vmatprep.mubr.f32.mxu0 0.0
  %407 = vmatmul.mubr.f32.gmra.mrb[0].mxu0 %v266
  %v408 = vpop.f32.mrb[0].mxu0
  %v409 = vadd.f32 0.0, %v408
  %v410 = vpop.f32.mrb[0].mxu0
  %411 = vmatprep.mubr.f32.mxu0 0.0
  %412 = vmatmul.mubr.f32.gmra.mrb[0].mxu0 %v267
  %v413 = vpop.f32.mrb[0].mxu0
  %v414 = vadd.f32 0.0, %v413
  %v415 = vpop.f32.mrb[0].mxu0
  %416 = vmatprep.mubr.f32.mxu0 0.0
  %417 = vmatmul.mubr.f32.gmra.mrb[0].mxu0 %v268
  %v418 = vpop.f32.mrb[0].mxu0
  %v419 = vadd.f32 0.0, %v418
  %v420 = vpop.f32.mrb[0].mxu0
  %421 = vmatprep.mubr.f32.mxu0 0.0
  %422 = vmatmul.mubr.f32.gmra.mrb[0].mxu0 %v269
  %v423 = vpop.f32.mrb[0].mxu0
  %v424 = vadd.f32 0.0, %v423
  %v425 = vpop.f32.mrb[0].mxu0
  %426 = vmatprep.mubr.f32.mxu0 0.0
  %427 = vmatmul.mubr.f32.gmra.mrb[0].mxu0 %v270
  %v428 = vpop.f32.mrb[0].mxu0
  %v429 = vadd.f32 0.0, %v428
  %v430 = vpop.f32.mrb[0].mxu0
  %431 = vdwg.mxu0
  %v432 = vld [vmem:[%s4] sm:$0x1]
  %v434 = vlaneseq
  %v435 = vshrl.u32 %v434, 7
  %v436 = vsub.s32 0, %v435
  %v437 = vrot.slane %v432, %v436
  %v439 = vmul.f32 %v354, %v437
  %v440 = vmul.f32 %v359, %v437
  %v441 = vmul.f32 %v364, %v437
  %v442 = vmul.f32 %v369, %v437
  %v443 = vmul.f32 %v374, %v437
  %v444 = vmul.f32 %v379, %v437
  %v445 = vmul.f32 %v384, %v437
  %v446 = vmul.f32 %v389, %v437
  %v447 = vmul.f32 %v394, %v437
  %v448 = vmul.f32 %v399, %v437
  %v449 = vmul.f32 %v404, %v437
  %v450 = vmul.f32 %v409, %v437
  %v451 = vmul.f32 %v414, %v437
  %v452 = vmul.f32 %v419, %v437
  %v453 = vmul.f32 %v424, %v437
  %v454 = vmul.f32 %v429, %v437
  %v455 = vld [vmem:[%s6] sm:$0x1]
  %v457 = vlaneseq
  %v458 = vshrl.u32 %v457, 7
  %v459 = vsub.s32 0, %v458
  %v460 = vrot.slane %v455, %v459
  %v462 = vadd.f32 %v439, %v460
  %v463 = vadd.f32 %v440, %v460
  %v464 = vadd.f32 %v441, %v460
  %v465 = vadd.f32 %v442, %v460
  %v466 = vadd.f32 %v443, %v460
  %v467 = vadd.f32 %v444, %v460
  %v468 = vadd.f32 %v445, %v460
  %v469 = vadd.f32 %v446, %v460
  %v470 = vadd.f32 %v447, %v460
  %v471 = vadd.f32 %v448, %v460
  %v472 = vadd.f32 %v449, %v460
  %v473 = vadd.f32 %v450, %v460
  %v474 = vadd.f32 %v451, %v460
  %v475 = vadd.f32 %v452, %v460
  %v476 = vadd.f32 %v453, %v460
  %v477 = vadd.f32 %v454, %v460
  %v478 = vld [vmem:[%s3] sm:$0xff]
  %v479 = vld [vmem:[%s3 + $0x8] sm:$0xff]
  %v480 = vld [vmem:[%s3 + $0x10] sm:$0xff]
  %v481 = vld [vmem:[%s3 + $0x18] sm:$0xff]
  %v482 = vld [vmem:[%s3 + $0x20] sm:$0xff]
  %v483 = vld [vmem:[%s3 + $0x28] sm:$0xff]
  %v484 = vld [vmem:[%s3 + $0x30] sm:$0xff]
  %v485 = vld [vmem:[%s3 + $0x38] sm:$0xff]
  %v486 = vld [vmem:[%s3 + $0x40] sm:$0xff]
  %v487 = vld [vmem:[%s3 + $0x48] sm:$0xff]
  %v488 = vld [vmem:[%s3 + $0x50] sm:$0xff]
  %v489 = vld [vmem:[%s3 + $0x58] sm:$0xff]
  %v490 = vld [vmem:[%s3 + $0x60] sm:$0xff]
  %v491 = vld [vmem:[%s3 + $0x68] sm:$0xff]
  %v492 = vld [vmem:[%s3 + $0x70] sm:$0xff]
  %v493 = vld [vmem:[%s3 + $0x78] sm:$0xff]
  %v494 = vld [vmem:[%s5] sm:$0x1]
  %495 = vset.pattern.permute.xlu0 0
  %496 = vperm.xlu0 %495, %v478
  %v497 = vpop.permute.xlu0 %496
  %498 = vset.pattern.permute.xlu0 0
  %499 = vperm.xlu0 %498, %v479
  %v500 = vpop.permute.xlu0 %499
  %501 = vset.pattern.permute.xlu0 0
  %502 = vperm.xlu0 %501, %v480
  %v503 = vpop.permute.xlu0 %502
  %504 = vset.pattern.permute.xlu0 0
  %505 = vperm.xlu0 %504, %v481
  %v506 = vpop.permute.xlu0 %505
  %507 = vset.pattern.permute.xlu0 0
  %508 = vperm.xlu0 %507, %v482
  %v509 = vpop.permute.xlu0 %508
  %510 = vset.pattern.permute.xlu0 0
  %511 = vperm.xlu0 %510, %v483
  %v512 = vpop.permute.xlu0 %511
  %513 = vset.pattern.permute.xlu0 0
  %514 = vperm.xlu0 %513, %v484
  %v515 = vpop.permute.xlu0 %514
  %516 = vset.pattern.permute.xlu0 0
  %517 = vperm.xlu0 %516, %v485
  %v518 = vpop.permute.xlu0 %517
  %519 = vset.pattern.permute.xlu0 0
  %520 = vperm.xlu0 %519, %v486
  %v521 = vpop.permute.xlu0 %520
  %522 = vset.pattern.permute.xlu0 0
  %523 = vperm.xlu0 %522, %v487
  %v524 = vpop.permute.xlu0 %523
  %525 = vset.pattern.permute.xlu0 0
  %526 = vperm.xlu0 %525, %v488
  %v527 = vpop.permute.xlu0 %526
  %528 = vset.pattern.permute.xlu0 0
  %529 = vperm.xlu0 %528, %v489
  %v530 = vpop.permute.xlu0 %529
  %531 = vset.pattern.permute.xlu0 0
  %532 = vperm.xlu0 %531, %v490
  %v533 = vpop.permute.xlu0 %532
  %534 = vset.pattern.permute.xlu0 0
  %535 = vperm.xlu0 %534, %v491
  %v536 = vpop.permute.xlu0 %535
  %537 = vset.pattern.permute.xlu0 0
  %538 = vperm.xlu0 %537, %v492
  %v539 = vpop.permute.xlu0 %538
  %540 = vset.pattern.permute.xlu0 0
  %541 = vperm.xlu0 %540, %v493
  %v542 = vpop.permute.xlu0 %541
  %v543 = vlaneseq
  %v544 = vshrl.u32 %v543, 7
  %v545 = vsub.s32 0, %v544
  %v546 = vrot.slane %v494, %v545
  %vm547 = vcmp.eq.s32.totalorder %v497, %v546
  %vm548 = vcmp.eq.s32.totalorder %v500, %v546
  %vm549 = vcmp.eq.s32.totalorder %v503, %v546
  %vm550 = vcmp.eq.s32.totalorder %v506, %v546
  %vm551 = vcmp.eq.s32.totalorder %v509, %v546
  %vm552 = vcmp.eq.s32.totalorder %v512, %v546
  %vm553 = vcmp.eq.s32.totalorder %v515, %v546
  %vm554 = vcmp.eq.s32.totalorder %v518, %v546
  %vm555 = vcmp.eq.s32.totalorder %v521, %v546
  %vm556 = vcmp.eq.s32.totalorder %v524, %v546
  %vm557 = vcmp.eq.s32.totalorder %v527, %v546
  %vm558 = vcmp.eq.s32.totalorder %v530, %v546
  %vm559 = vcmp.eq.s32.totalorder %v533, %v546
  %vm560 = vcmp.eq.s32.totalorder %v536, %v546
  %vm561 = vcmp.eq.s32.totalorder %v539, %v546
  %vm562 = vcmp.eq.s32.totalorder %v542, %v546
  %v563 = vsel %vm547, 1, 0
  %v564 = vsel %vm548, 1, 0
  %v565 = vsel %vm549, 1, 0
  %v566 = vsel %vm550, 1, 0
  %v567 = vsel %vm551, 1, 0
  %v568 = vsel %vm552, 1, 0
  %v569 = vsel %vm553, 1, 0
  %v570 = vsel %vm554, 1, 0
  %v571 = vsel %vm555, 1, 0
  %v572 = vsel %vm556, 1, 0
  %v573 = vsel %vm557, 1, 0
  %v574 = vsel %vm558, 1, 0
  %v575 = vsel %vm559, 1, 0
  %v576 = vsel %vm560, 1, 0
  %v577 = vsel %vm561, 1, 0
  %v578 = vsel %vm562, 1, 0
  %v579 = vcvt.s32.f32 %v563
  %v580 = vcvt.s32.f32 %v564
  %v581 = vcvt.s32.f32 %v565
  %v582 = vcvt.s32.f32 %v566
  %v583 = vcvt.s32.f32 %v567
  %v584 = vcvt.s32.f32 %v568
  %v585 = vcvt.s32.f32 %v569
  %v586 = vcvt.s32.f32 %v570
  %v587 = vcvt.s32.f32 %v571
  %v588 = vcvt.s32.f32 %v572
  %v589 = vcvt.s32.f32 %v573
  %v590 = vcvt.s32.f32 %v574
  %v591 = vcvt.s32.f32 %v575
  %v592 = vcvt.s32.f32 %v576
  %v593 = vcvt.s32.f32 %v577
  %v594 = vcvt.s32.f32 %v578
  %v595 = vld [vmem:[#allocation3] sm:$0xff]
  %v596 = vld [vmem:[#allocation3 + $0x8] sm:$0xff]
  %v597 = vld [vmem:[#allocation3 + $0x10] sm:$0xff]
  %v598 = vld [vmem:[#allocation3 + $0x18] sm:$0xff]
  %v599 = vld [vmem:[#allocation3 + $0x20] sm:$0xff]
  %v600 = vld [vmem:[#allocation3 + $0x28] sm:$0xff]
  %v601 = vld [vmem:[#allocation3 + $0x30] sm:$0xff]
  %v602 = vld [vmem:[#allocation3 + $0x38] sm:$0xff]
  %v603 = vld [vmem:[#allocation3 + $0x40] sm:$0xff]
  %v604 = vld [vmem:[#allocation3 + $0x48] sm:$0xff]
  %v605 = vld [vmem:[#allocation3 + $0x50] sm:$0xff]
  %v606 = vld [vmem:[#allocation3 + $0x58] sm:$0xff]
  %v607 = vld [vmem:[#allocation3 + $0x60] sm:$0xff]
  %v608 = vld [vmem:[#allocation3 + $0x68] sm:$0xff]
  %v609 = vld [vmem:[#allocation3 + $0x70] sm:$0xff]
  %v610 = vld [vmem:[#allocation3 + $0x78] sm:$0xff]
  %611 = vmax.xlane.f32.xlu0 %v462
  %v612 = vpop.xlane.xlu0 %611
  %613 = vmax.xlane.f32.xlu0 %v463
  %v614 = vpop.xlane.xlu0 %613
  %615 = vmax.xlane.f32.xlu0 %v464
  %v616 = vpop.xlane.xlu0 %615
  %617 = vmax.xlane.f32.xlu0 %v465
  %v618 = vpop.xlane.xlu0 %617
  %619 = vmax.xlane.f32.xlu0 %v466
  %v620 = vpop.xlane.xlu0 %619
  %621 = vmax.xlane.f32.xlu0 %v467
  %v622 = vpop.xlane.xlu0 %621
  %623 = vmax.xlane.f32.xlu0 %v468
  %v624 = vpop.xlane.xlu0 %623
  %625 = vmax.xlane.f32.xlu0 %v469
  %v626 = vpop.xlane.xlu0 %625
  %627 = vmax.xlane.f32.xlu0 %v470
  %v628 = vpop.xlane.xlu0 %627
  %629 = vmax.xlane.f32.xlu0 %v471
  %v630 = vpop.xlane.xlu0 %629
  %631 = vmax.xlane.f32.xlu0 %v472
  %v632 = vpop.xlane.xlu0 %631
  %633 = vmax.xlane.f32.xlu0 %v473
  %v634 = vpop.xlane.xlu0 %633
  %635 = vmax.xlane.f32.xlu0 %v474
  %v636 = vpop.xlane.xlu0 %635
  %637 = vmax.xlane.f32.xlu0 %v475
  %v638 = vpop.xlane.xlu0 %637
  %639 = vmax.xlane.f32.xlu0 %v476
  %v640 = vpop.xlane.xlu0 %639
  %641 = vmax.xlane.f32.xlu0 %v477
  %v642 = vpop.xlane.xlu0 %641
  %v643 = vmax.f32 %v595, %v612
  %v644 = vmax.f32 %v596, %v614
  %v645 = vmax.f32 %v597, %v616
  %v646 = vmax.f32 %v598, %v618
  %v647 = vmax.f32 %v599, %v620
  %v648 = vmax.f32 %v600, %v622
  %v649 = vmax.f32 %v601, %v624
  %v650 = vmax.f32 %v602, %v626
  %v651 = vmax.f32 %v603, %v628
  %v652 = vmax.f32 %v604, %v630
  %v653 = vmax.f32 %v605, %v632
  %v654 = vmax.f32 %v606, %v634
  %v655 = vmax.f32 %v607, %v636
  %v656 = vmax.f32 %v608, %v638
  %v657 = vmax.f32 %v609, %v640
  %v658 = vmax.f32 %v610, %v642
  %v659 = vsub.f32 %v595, %v643
  %v660 = vsub.f32 %v596, %v644
  %v661 = vsub.f32 %v597, %v645
  %v662 = vsub.f32 %v598, %v646
  %v663 = vsub.f32 %v599, %v647
  %v664 = vsub.f32 %v600, %v648
  %v665 = vsub.f32 %v601, %v649
  %v666 = vsub.f32 %v602, %v650
  %v667 = vsub.f32 %v603, %v651
  %v668 = vsub.f32 %v604, %v652
  %v669 = vsub.f32 %v605, %v653
  %v670 = vsub.f32 %v606, %v654
  %v671 = vsub.f32 %v607, %v655
  %v672 = vsub.f32 %v608, %v656
  %v673 = vsub.f32 %v609, %v657
  %v674 = vsub.f32 %v610, %v658
  %v675 = vmul.f32 %v659, 1.442695
  %v676 = vpow.pop %v675
  %v677 = vmul.f32 %v660, 1.442695
  %v678 = vpow.pop %v677
  %v679 = vmul.f32 %v661, 1.442695
  %v680 = vpow.pop %v679
  %v681 = vmul.f32 %v662, 1.442695
  %v682 = vpow.pop %v681
  %v683 = vmul.f32 %v663, 1.442695
  %v684 = vpow.pop %v683
  %v685 = vmul.f32 %v664, 1.442695
  %v686 = vpow.pop %v685
  %v687 = vmul.f32 %v665, 1.442695
  %v688 = vpow.pop %v687
  %v689 = vmul.f32 %v666, 1.442695
  %v690 = vpow.pop %v689
  %v691 = vmul.f32 %v667, 1.442695
  %v692 = vpow.pop %v691
  %v693 = vmul.f32 %v668, 1.442695
  %v694 = vpow.pop %v693
  %v695 = vmul.f32 %v669, 1.442695
  %v696 = vpow.pop %v695
  %v697 = vmul.f32 %v670, 1.442695
  %v698 = vpow.pop %v697
  %v699 = vmul.f32 %v671, 1.442695
  %v700 = vpow.pop %v699
  %v701 = vmul.f32 %v672, 1.442695
  %v702 = vpow.pop %v701
  %v703 = vmul.f32 %v673, 1.442695
  %v704 = vpow.pop %v703
  %v705 = vmul.f32 %v674, 1.442695
  %v706 = vpow.pop %v705
  %708 = vset.pattern.permute.xlu0 0
  %709 = vperm.xlu0 %708, %v643
  %v710 = vpop.permute.xlu0 %709
  %713 = vset.pattern.permute.xlu0 0
  %714 = vperm.xlu0 %713, %v644
  %v715 = vpop.permute.xlu0 %714
  %718 = vset.pattern.permute.xlu0 0
  %719 = vperm.xlu0 %718, %v645
  %v720 = vpop.permute.xlu0 %719
  %723 = vset.pattern.permute.xlu0 0
  %724 = vperm.xlu0 %723, %v646
  %v725 = vpop.permute.xlu0 %724
  %728 = vset.pattern.permute.xlu0 0
  %729 = vperm.xlu0 %728, %v647
  %v730 = vpop.permute.xlu0 %729
  %733 = vset.pattern.permute.xlu0 0
  %734 = vperm.xlu0 %733, %v648
  %v735 = vpop.permute.xlu0 %734
  %738 = vset.pattern.permute.xlu0 0
  %739 = vperm.xlu0 %738, %v649
  %v740 = vpop.permute.xlu0 %739
  %743 = vset.pattern.permute.xlu0 0
  %744 = vperm.xlu0 %743, %v650
  %v745 = vpop.permute.xlu0 %744
  %748 = vset.pattern.permute.xlu0 0
  %749 = vperm.xlu0 %748, %v651
  %v750 = vpop.permute.xlu0 %749
  %753 = vset.pattern.permute.xlu0 0
  %754 = vperm.xlu0 %753, %v652
  %v755 = vpop.permute.xlu0 %754
  %758 = vset.pattern.permute.xlu0 0
  %759 = vperm.xlu0 %758, %v653
  %v760 = vpop.permute.xlu0 %759
  %763 = vset.pattern.permute.xlu0 0
  %764 = vperm.xlu0 %763, %v654
  %v765 = vpop.permute.xlu0 %764
  %768 = vset.pattern.permute.xlu0 0
  %769 = vperm.xlu0 %768, %v655
  %v770 = vpop.permute.xlu0 %769
  %773 = vset.pattern.permute.xlu0 0
  %774 = vperm.xlu0 %773, %v656
  %v775 = vpop.permute.xlu0 %774
  %778 = vset.pattern.permute.xlu0 0
  %779 = vperm.xlu0 %778, %v657
  %v780 = vpop.permute.xlu0 %779
  %783 = vset.pattern.permute.xlu0 0
  %784 = vperm.xlu0 %783, %v658
  %v785 = vpop.permute.xlu0 %784
  %v787 = vsub.f32 %v462, %v710
  %v788 = vsub.f32 %v463, %v715
  %v789 = vsub.f32 %v464, %v720
  %v790 = vsub.f32 %v465, %v725
  %v791 = vsub.f32 %v466, %v730
  %v792 = vsub.f32 %v467, %v735
  %v793 = vsub.f32 %v468, %v740
  %v794 = vsub.f32 %v469, %v745
  %v795 = vsub.f32 %v470, %v750
  %v796 = vsub.f32 %v471, %v755
  %v797 = vsub.f32 %v472, %v760
  %v798 = vsub.f32 %v473, %v765
  %v799 = vsub.f32 %v474, %v770
  %v800 = vsub.f32 %v475, %v775
  %v801 = vsub.f32 %v476, %v780
  %v802 = vsub.f32 %v477, %v785
  %v803 = vmul.f32 %v787, 1.442695
  %v804 = vpow.pop %v803
  %v805 = vmul.f32 %v788, 1.442695
  %v806 = vpow.pop %v805
  %v807 = vmul.f32 %v789, 1.442695
  %v808 = vpow.pop %v807
  %v809 = vmul.f32 %v790, 1.442695
  %v810 = vpow.pop %v809
  %v811 = vmul.f32 %v791, 1.442695
  %v812 = vpow.pop %v811
  %v813 = vmul.f32 %v792, 1.442695
  %v814 = vpow.pop %v813
  %v815 = vmul.f32 %v793, 1.442695
  %v816 = vpow.pop %v815
  %v817 = vmul.f32 %v794, 1.442695
  %v818 = vpow.pop %v817
  %v819 = vmul.f32 %v795, 1.442695
  %v820 = vpow.pop %v819
  %v821 = vmul.f32 %v796, 1.442695
  %v822 = vpow.pop %v821
  %v823 = vmul.f32 %v797, 1.442695
  %v824 = vpow.pop %v823
  %v825 = vmul.f32 %v798, 1.442695
  %v826 = vpow.pop %v825
  %v827 = vmul.f32 %v799, 1.442695
  %v828 = vpow.pop %v827
  %v829 = vmul.f32 %v800, 1.442695
  %v830 = vpow.pop %v829
  %v831 = vmul.f32 %v801, 1.442695
  %v832 = vpow.pop %v831
  %v833 = vmul.f32 %v802, 1.442695
  %v834 = vpow.pop %v833
  %v835 = vld [vmem:[#allocation4] sm:$0xff]
  %v836 = vld [vmem:[#allocation4 + $0x8] sm:$0xff]
  %v837 = vld [vmem:[#allocation4 + $0x10] sm:$0xff]
  %v838 = vld [vmem:[#allocation4 + $0x18] sm:$0xff]
  %v839 = vld [vmem:[#allocation4 + $0x20] sm:$0xff]
  %v840 = vld [vmem:[#allocation4 + $0x28] sm:$0xff]
  %v841 = vld [vmem:[#allocation4 + $0x30] sm:$0xff]
  %v842 = vld [vmem:[#allocation4 + $0x38] sm:$0xff]
  %v843 = vld [vmem:[#allocation4 + $0x40] sm:$0xff]
  %v844 = vld [vmem:[#allocation4 + $0x48] sm:$0xff]
  %v845 = vld [vmem:[#allocation4 + $0x50] sm:$0xff]
  %v846 = vld [vmem:[#allocation4 + $0x58] sm:$0xff]
  %v847 = vld [vmem:[#allocation4 + $0x60] sm:$0xff]
  %v848 = vld [vmem:[#allocation4 + $0x68] sm:$0xff]
  %v849 = vld [vmem:[#allocation4 + $0x70] sm:$0xff]
  %v850 = vld [vmem:[#allocation4 + $0x78] sm:$0xff]
  %v851 = vmul.f32 %v676, %v835
  %v852 = vmul.f32 %v678, %v836
  %v853 = vmul.f32 %v680, %v837
  %v854 = vmul.f32 %v682, %v838
  %v855 = vmul.f32 %v684, %v839
  %v856 = vmul.f32 %v686, %v840
  %v857 = vmul.f32 %v688, %v841
  %v858 = vmul.f32 %v690, %v842
  %v859 = vmul.f32 %v692, %v843
  %v860 = vmul.f32 %v694, %v844
  %v861 = vmul.f32 %v696, %v845
  %v862 = vmul.f32 %v698, %v846
  %v863 = vmul.f32 %v700, %v847
  %v864 = vmul.f32 %v702, %v848
  %v865 = vmul.f32 %v704, %v849
  %v866 = vmul.f32 %v706, %v850
  %867 = vadd.xlane.f32.xlu0 %v804
  %v868 = vpop.xlane.xlu0 %867
  %869 = vadd.xlane.f32.xlu0 %v806
  %v870 = vpop.xlane.xlu0 %869
  %871 = vadd.xlane.f32.xlu0 %v808
  %v872 = vpop.xlane.xlu0 %871
  %873 = vadd.xlane.f32.xlu0 %v810
  %v874 = vpop.xlane.xlu0 %873
  %875 = vadd.xlane.f32.xlu0 %v812
  %v876 = vpop.xlane.xlu0 %875
  %877 = vadd.xlane.f32.xlu0 %v814
  %v878 = vpop.xlane.xlu0 %877
  %879 = vadd.xlane.f32.xlu0 %v816
  %v880 = vpop.xlane.xlu0 %879
  %881 = vadd.xlane.f32.xlu0 %v818
  %v882 = vpop.xlane.xlu0 %881
  %883 = vadd.xlane.f32.xlu0 %v820
  %v884 = vpop.xlane.xlu0 %883
  %885 = vadd.xlane.f32.xlu0 %v822
  %v886 = vpop.xlane.xlu0 %885
  %887 = vadd.xlane.f32.xlu0 %v824
  %v888 = vpop.xlane.xlu0 %887
  %889 = vadd.xlane.f32.xlu0 %v826
  %v890 = vpop.xlane.xlu0 %889
  %891 = vadd.xlane.f32.xlu0 %v828
  %v892 = vpop.xlane.xlu0 %891
  %893 = vadd.xlane.f32.xlu0 %v830
  %v894 = vpop.xlane.xlu0 %893
  %895 = vadd.xlane.f32.xlu0 %v832
  %v896 = vpop.xlane.xlu0 %895
  %897 = vadd.xlane.f32.xlu0 %v834
  %v898 = vpop.xlane.xlu0 %897
  %v899 = vadd.f32 %v851, %v868
  %v900 = vadd.f32 %v852, %v870
  %v901 = vadd.f32 %v853, %v872
  %v902 = vadd.f32 %v854, %v874
  %v903 = vadd.f32 %v855, %v876
  %v904 = vadd.f32 %v856, %v878
  %v905 = vadd.f32 %v857, %v880
  %v906 = vadd.f32 %v858, %v882
  %v907 = vadd.f32 %v859, %v884
  %v908 = vadd.f32 %v860, %v886
  %v909 = vadd.f32 %v861, %v888
  %v910 = vadd.f32 %v862, %v890
  %v911 = vadd.f32 %v863, %v892
  %v912 = vadd.f32 %v864, %v894
  %v913 = vadd.f32 %v865, %v896
  %v914 = vadd.f32 %v866, %v898
  %vm915 = vcmask 7168
  %916 = vst.msk [vmem:[#allocation4] sm:$0xff] %vm915, %v899
  %917 = vst.msk [vmem:[#allocation4 + $0x8] sm:$0xff] %vm915, %v900
  %918 = vst.msk [vmem:[#allocation4 + $0x10] sm:$0xff] %vm915, %v901
  %919 = vst.msk [vmem:[#allocation4 + $0x18] sm:$0xff] %vm915, %v902
  %920 = vst.msk [vmem:[#allocation4 + $0x20] sm:$0xff] %vm915, %v903
  %921 = vst.msk [vmem:[#allocation4 + $0x28] sm:$0xff] %vm915, %v904
  %922 = vst.msk [vmem:[#allocation4 + $0x30] sm:$0xff] %vm915, %v905
  %923 = vst.msk [vmem:[#allocation4 + $0x38] sm:$0xff] %vm915, %v906
  %924 = vst.msk [vmem:[#allocation4 + $0x40] sm:$0xff] %vm915, %v907
  %925 = vst.msk [vmem:[#allocation4 + $0x48] sm:$0xff] %vm915, %v908
  %926 = vst.msk [vmem:[#allocation4 + $0x50] sm:$0xff] %vm915, %v909
  %927 = vst.msk [vmem:[#allocation4 + $0x58] sm:$0xff] %vm915, %v910
  %928 = vst.msk [vmem:[#allocation4 + $0x60] sm:$0xff] %vm915, %v911
  %929 = vst.msk [vmem:[#allocation4 + $0x68] sm:$0xff] %vm915, %v912
  %930 = vst.msk [vmem:[#allocation4 + $0x70] sm:$0xff] %vm915, %v913
  %931 = vst.msk [vmem:[#allocation4 + $0x78] sm:$0xff] %vm915, %v914
  %932 = vst.msk [vmem:[#allocation3] sm:$0xff] %vm915, %v643
  %933 = vst.msk [vmem:[#allocation3 + $0x8] sm:$0xff] %vm915, %v644
  %934 = vst.msk [vmem:[#allocation3 + $0x10] sm:$0xff] %vm915, %v645
  %935 = vst.msk [vmem:[#allocation3 + $0x18] sm:$0xff] %vm915, %v646
  %936 = vst.msk [vmem:[#allocation3 + $0x20] sm:$0xff] %vm915, %v647
  %937 = vst.msk [vmem:[#allocation3 + $0x28] sm:$0xff] %vm915, %v648
  %938 = vst.msk [vmem:[#allocation3 + $0x30] sm:$0xff] %vm915, %v649
  %939 = vst.msk [vmem:[#allocation3 + $0x38] sm:$0xff] %vm915, %v650
  %940 = vst.msk [vmem:[#allocation3 + $0x40] sm:$0xff] %vm915, %v651
  %941 = vst.msk [vmem:[#allocation3 + $0x48] sm:$0xff] %vm915, %v652
  %942 = vst.msk [vmem:[#allocation3 + $0x50] sm:$0xff] %vm915, %v653
  %943 = vst.msk [vmem:[#allocation3 + $0x58] sm:$0xff] %vm915, %v654
  %944 = vst.msk [vmem:[#allocation3 + $0x60] sm:$0xff] %vm915, %v655
  %945 = vst.msk [vmem:[#allocation3 + $0x68] sm:$0xff] %vm915, %v656
  %946 = vst.msk [vmem:[#allocation3 + $0x70] sm:$0xff] %vm915, %v657
  %947 = vst.msk [vmem:[#allocation3 + $0x78] sm:$0xff] %vm915, %v658
  %v948 = vld [vmem:[#allocation5] sm:$0xff]
  %v949 = vld [vmem:[#allocation5 + $0x8] sm:$0xff]
  %v950 = vld [vmem:[#allocation5 + $0x10] sm:$0xff]
  %v951 = vld [vmem:[#allocation5 + $0x18] sm:$0xff]
  %v952 = vld [vmem:[#allocation5 + $0x20] sm:$0xff]
  %v953 = vld [vmem:[#allocation5 + $0x28] sm:$0xff]
  %v954 = vld [vmem:[#allocation5 + $0x30] sm:$0xff]
  %v955 = vld [vmem:[#allocation5 + $0x38] sm:$0xff]
  %v956 = vld [vmem:[#allocation5 + $0x40] sm:$0xff]
  %v957 = vld [vmem:[#allocation5 + $0x48] sm:$0xff]
  %v958 = vld [vmem:[#allocation5 + $0x50] sm:$0xff]
  %v959 = vld [vmem:[#allocation5 + $0x58] sm:$0xff]
  %v960 = vld [vmem:[#allocation5 + $0x60] sm:$0xff]
  %v961 = vld [vmem:[#allocation5 + $0x68] sm:$0xff]
  %v962 = vld [vmem:[#allocation5 + $0x70] sm:$0xff]
  %v963 = vld [vmem:[#allocation5 + $0x78] sm:$0xff]
  %v964 = vmul.f32 %v579, %v462
  %v965 = vmul.f32 %v580, %v463
  %v966 = vmul.f32 %v581, %v464
  %v967 = vmul.f32 %v582, %v465
  %v968 = vmul.f32 %v583, %v466
  %v969 = vmul.f32 %v584, %v467
  %v970 = vmul.f32 %v585, %v468
  %v971 = vmul.f32 %v586, %v469
  %v972 = vmul.f32 %v587, %v470
  %v973 = vmul.f32 %v588, %v471
  %v974 = vmul.f32 %v589, %v472
  %v975 = vmul.f32 %v590, %v473
  %v976 = vmul.f32 %v591, %v474
  %v977 = vmul.f32 %v592, %v475
  %v978 = vmul.f32 %v593, %v476
  %v979 = vmul.f32 %v594, %v477
  %980 = vadd.xlane.f32.xlu0 %v964
  %v981 = vpop.xlane.xlu0 %980
  %982 = vadd.xlane.f32.xlu0 %v965
  %v983 = vpop.xlane.xlu0 %982
  %984 = vadd.xlane.f32.xlu0 %v966
  %v985 = vpop.xlane.xlu0 %984
  %986 = vadd.xlane.f32.xlu0 %v967
  %v987 = vpop.xlane.xlu0 %986
  %988 = vadd.xlane.f32.xlu0 %v968
  %v989 = vpop.xlane.xlu0 %988
  %990 = vadd.xlane.f32.xlu0 %v969
  %v991 = vpop.xlane.xlu0 %990
  %992 = vadd.xlane.f32.xlu0 %v970
  %v993 = vpop.xlane.xlu0 %992
  %994 = vadd.xlane.f32.xlu0 %v971
  %v995 = vpop.xlane.xlu0 %994
  %996 = vadd.xlane.f32.xlu0 %v972
  %v997 = vpop.xlane.xlu0 %996
  %998 = vadd.xlane.f32.xlu0 %v973
  %v999 = vpop.xlane.xlu0 %998
  %1000 = vadd.xlane.f32.xlu0 %v974
  %v1001 = vpop.xlane.xlu0 %1000
  %1002 = vadd.xlane.f32.xlu0 %v975
  %v1003 = vpop.xlane.xlu0 %1002
  %1004 = vadd.xlane.f32.xlu0 %v976
  %v1005 = vpop.xlane.xlu0 %1004
  %1006 = vadd.xlane.f32.xlu0 %v977
  %v1007 = vpop.xlane.xlu0 %1006
  %1008 = vadd.xlane.f32.xlu0 %v978
  %v1009 = vpop.xlane.xlu0 %1008
  %1010 = vadd.xlane.f32.xlu0 %v979
  %v1011 = vpop.xlane.xlu0 %1010
  %v1012 = vadd.f32 %v948, %v981
  %v1013 = vadd.f32 %v949, %v983
  %v1014 = vadd.f32 %v950, %v985
  %v1015 = vadd.f32 %v951, %v987
  %v1016 = vadd.f32 %v952, %v989
  %v1017 = vadd.f32 %v953, %v991
  %v1018 = vadd.f32 %v954, %v993
  %v1019 = vadd.f32 %v955, %v995
  %v1020 = vadd.f32 %v956, %v997
  %v1021 = vadd.f32 %v957, %v999
  %v1022 = vadd.f32 %v958, %v1001
  %v1023 = vadd.f32 %v959, %v1003
  %v1024 = vadd.f32 %v960, %v1005
  %v1025 = vadd.f32 %v961, %v1007
  %v1026 = vadd.f32 %v962, %v1009
  %v1027 = vadd.f32 %v963, %v1011
  %1028 = vst.msk [vmem:[#allocation5] sm:$0xff] %vm915, %v1012
  %1029 = vst.msk [vmem:[#allocation5 + $0x8] sm:$0xff] %vm915, %v1013
  %1030 = vst.msk [vmem:[#allocation5 + $0x10] sm:$0xff] %vm915, %v1014
  %1031 = vst.msk [vmem:[#allocation5 + $0x18] sm:$0xff] %vm915, %v1015
  %1032 = vst.msk [vmem:[#allocation5 + $0x20] sm:$0xff] %vm915, %v1016
  %1033 = vst.msk [vmem:[#allocation5 + $0x28] sm:$0xff] %vm915, %v1017
  %1034 = vst.msk [vmem:[#allocation5 + $0x30] sm:$0xff] %vm915, %v1018
  %1035 = vst.msk [vmem:[#allocation5 + $0x38] sm:$0xff] %vm915, %v1019
  %1036 = vst.msk [vmem:[#allocation5 + $0x40] sm:$0xff] %vm915, %v1020
  %1037 = vst.msk [vmem:[#allocation5 + $0x48] sm:$0xff] %vm915, %v1021
  %1038 = vst.msk [vmem:[#allocation5 + $0x50] sm:$0xff] %vm915, %v1022
  %1039 = vst.msk [vmem:[#allocation5 + $0x58] sm:$0xff] %vm915, %v1023
  %1040 = vst.msk [vmem:[#allocation5 + $0x60] sm:$0xff] %vm915, %v1024
  %1041 = vst.msk [vmem:[#allocation5 + $0x68] sm:$0xff] %vm915, %v1025
  %1042 = vst.msk [vmem:[#allocation5 + $0x70] sm:$0xff] %vm915, %v1026
  %1043 = vst.msk [vmem:[#allocation5 + $0x78] sm:$0xff] %vm915, %v1027
  %v1044 = vld [vmem:[#allocation6] sm:$0xff]
  %v1045 = vld [vmem:[#allocation6 + $0x8] sm:$0xff]
  %v1046 = vld [vmem:[#allocation6 + $0x10] sm:$0xff]
  %v1047 = vld [vmem:[#allocation6 + $0x18] sm:$0xff]
  %v1048 = vld [vmem:[#allocation6 + $0x20] sm:$0xff]
  %v1049 = vld [vmem:[#allocation6 + $0x28] sm:$0xff]
  %v1050 = vld [vmem:[#allocation6 + $0x30] sm:$0xff]
  %v1051 = vld [vmem:[#allocation6 + $0x38] sm:$0xff]
  %v1052 = vld [vmem:[#allocation6 + $0x40] sm:$0xff]
  %v1053 = vld [vmem:[#allocation6 + $0x48] sm:$0xff]
  %v1054 = vld [vmem:[#allocation6 + $0x50] sm:$0xff]
  %v1055 = vld [vmem:[#allocation6 + $0x58] sm:$0xff]
  %v1056 = vld [vmem:[#allocation6 + $0x60] sm:$0xff]
  %v1057 = vld [vmem:[#allocation6 + $0x68] sm:$0xff]
  %v1058 = vld [vmem:[#allocation6 + $0x70] sm:$0xff]
  %v1059 = vld [vmem:[#allocation6 + $0x78] sm:$0xff]
  %1060 = vadd.xlane.f32.xlu0 %v579
  %v1061 = vpop.xlane.xlu0 %1060
  %1062 = vadd.xlane.f32.xlu0 %v580
  %v1063 = vpop.xlane.xlu0 %1062
  %1064 = vadd.xlane.f32.xlu0 %v581
  %v1065 = vpop.xlane.xlu0 %1064
  %1066 = vadd.xlane.f32.xlu0 %v582
  %v1067 = vpop.xlane.xlu0 %1066
  %1068 = vadd.xlane.f32.xlu0 %v583
  %v1069 = vpop.xlane.xlu0 %1068
  %1070 = vadd.xlane.f32.xlu0 %v584
  %v1071 = vpop.xlane.xlu0 %1070
  %1072 = vadd.xlane.f32.xlu0 %v585
  %v1073 = vpop.xlane.xlu0 %1072
  %1074 = vadd.xlane.f32.xlu0 %v586
  %v1075 = vpop.xlane.xlu0 %1074
  %1076 = vadd.xlane.f32.xlu0 %v587
  %v1077 = vpop.xlane.xlu0 %1076
  %1078 = vadd.xlane.f32.xlu0 %v588
  %v1079 = vpop.xlane.xlu0 %1078
  %1080 = vadd.xlane.f32.xlu0 %v589
  %v1081 = vpop.xlane.xlu0 %1080
  %1082 = vadd.xlane.f32.xlu0 %v590
  %v1083 = vpop.xlane.xlu0 %1082
  %1084 = vadd.xlane.f32.xlu0 %v591
  %v1085 = vpop.xlane.xlu0 %1084
  %1086 = vadd.xlane.f32.xlu0 %v592
  %v1087 = vpop.xlane.xlu0 %1086
  %1088 = vadd.xlane.f32.xlu0 %v593
  %v1089 = vpop.xlane.xlu0 %1088
  %1090 = vadd.xlane.f32.xlu0 %v594
  %v1091 = vpop.xlane.xlu0 %1090
  %v1092 = vadd.f32 %v1044, %v1061
  %v1093 = vadd.f32 %v1045, %v1063
  %v1094 = vadd.f32 %v1046, %v1065
  %v1095 = vadd.f32 %v1047, %v1067
  %v1096 = vadd.f32 %v1048, %v1069
  %v1097 = vadd.f32 %v1049, %v1071
  %v1098 = vadd.f32 %v1050, %v1073
  %v1099 = vadd.f32 %v1051, %v1075
  %v1100 = vadd.f32 %v1052, %v1077
  %v1101 = vadd.f32 %v1053, %v1079
  %v1102 = vadd.f32 %v1054, %v1081
  %v1103 = vadd.f32 %v1055, %v1083
  %v1104 = vadd.f32 %v1056, %v1085
  %v1105 = vadd.f32 %v1057, %v1087
  %v1106 = vadd.f32 %v1058, %v1089
  %v1107 = vadd.f32 %v1059, %v1091
  %1108 = vst.msk [vmem:[#allocation6] sm:$0xff] %vm915, %v1092
  %1109 = vst.msk [vmem:[#allocation6 + $0x8] sm:$0xff] %vm915, %v1093
  %1110 = vst.msk [vmem:[#allocation6 + $0x10] sm:$0xff] %vm915, %v1094
  %1111 = vst.msk [vmem:[#allocation6 + $0x18] sm:$0xff] %vm915, %v1095
  %1112 = vst.msk [vmem:[#allocation6 + $0x20] sm:$0xff] %vm915, %v1096
  %1113 = vst.msk [vmem:[#allocation6 + $0x28] sm:$0xff] %vm915, %v1097
  %1114 = vst.msk [vmem:[#allocation6 + $0x30] sm:$0xff] %vm915, %v1098
  %1115 = vst.msk [vmem:[#allocation6 + $0x38] sm:$0xff] %vm915, %v1099
  %1116 = vst.msk [vmem:[#allocation6 + $0x40] sm:$0xff] %vm915, %v1100
  %1117 = vst.msk [vmem:[#allocation6 + $0x48] sm:$0xff] %vm915, %v1101
  %1118 = vst.msk [vmem:[#allocation6 + $0x50] sm:$0xff] %vm915, %v1102
  %1119 = vst.msk [vmem:[#allocation6 + $0x58] sm:$0xff] %vm915, %v1103
  %1120 = vst.msk [vmem:[#allocation6 + $0x60] sm:$0xff] %vm915, %v1104
  %1121 = vst.msk [vmem:[#allocation6 + $0x68] sm:$0xff] %vm915, %v1105
  %1122 = vst.msk [vmem:[#allocation6 + $0x70] sm:$0xff] %vm915, %v1106
  %1123 = vst.msk [vmem:[#allocation6 + $0x78] sm:$0xff] %vm915, %v1107
  // Predicated region
  $region34: #{tpu_custom_call.1} parent=0 // pred_check
    %p1124 = pneg %p26
  $region35: #{tpu_custom_call.1} parent=0 // pred_check_branch
    %1126 = sbr.rel (%p1124) target = $region37
  $region36: #{tpu_custom_call.1} parent=0 // pred_region
    %v1127 = vld [vmem:[#allocation3] sm:$0xff]
    %v1128 = vld [vmem:[#allocation3 + $0x8] sm:$0xff]
    %v1129 = vld [vmem:[#allocation3 + $0x10] sm:$0xff]
    %v1130 = vld [vmem:[#allocation3 + $0x18] sm:$0xff]
    %v1131 = vld [vmem:[#allocation3 + $0x20] sm:$0xff]
    %v1132 = vld [vmem:[#allocation3 + $0x28] sm:$0xff]
    %v1133 = vld [vmem:[#allocation3 + $0x30] sm:$0xff]
    %v1134 = vld [vmem:[#allocation3 + $0x38] sm:$0xff]
    %v1135 = vld [vmem:[#allocation3 + $0x40] sm:$0xff]
    %v1136 = vld [vmem:[#allocation3 + $0x48] sm:$0xff]
    %v1137 = vld [vmem:[#allocation3 + $0x50] sm:$0xff]
    %v1138 = vld [vmem:[#allocation3 + $0x58] sm:$0xff]
    %v1139 = vld [vmem:[#allocation3 + $0x60] sm:$0xff]
    %v1140 = vld [vmem:[#allocation3 + $0x68] sm:$0xff]
    %v1141 = vld [vmem:[#allocation3 + $0x70] sm:$0xff]
    %v1142 = vld [vmem:[#allocation3 + $0x78] sm:$0xff]
    %v1143 = vld [vmem:[#allocation4] sm:$0xff]
    %v1144 = vld [vmem:[#allocation4 + $0x8] sm:$0xff]
    %v1145 = vld [vmem:[#allocation4 + $0x10] sm:$0xff]
    %v1146 = vld [vmem:[#allocation4 + $0x18] sm:$0xff]
    %v1147 = vld [vmem:[#allocation4 + $0x20] sm:$0xff]
    %v1148 = vld [vmem:[#allocation4 + $0x28] sm:$0xff]
    %v1149 = vld [vmem:[#allocation4 + $0x30] sm:$0xff]
    %v1150 = vld [vmem:[#allocation4 + $0x38] sm:$0xff]
    %v1151 = vld [vmem:[#allocation4 + $0x40] sm:$0xff]
    %v1152 = vld [vmem:[#allocation4 + $0x48] sm:$0xff]
    %v1153 = vld [vmem:[#allocation4 + $0x50] sm:$0xff]
    %v1154 = vld [vmem:[#allocation4 + $0x58] sm:$0xff]
    %v1155 = vld [vmem:[#allocation4 + $0x60] sm:$0xff]
    %v1156 = vld [vmem:[#allocation4 + $0x68] sm:$0xff]
    %v1157 = vld [vmem:[#allocation4 + $0x70] sm:$0xff]
    %v1158 = vld [vmem:[#allocation4 + $0x78] sm:$0xff]
    %v1159 = vlog2.pop %v1143
    %v1160 = vmul.f32 %v1159, 0.6931472
    %v1161 = vlog2.pop %v1144
    %v1162 = vmul.f32 %v1161, 0.6931472
    %v1163 = vlog2.pop %v1145
    %v1164 = vmul.f32 %v1163, 0.6931472
    %v1165 = vlog2.pop %v1146
    %v1166 = vmul.f32 %v1165, 0.6931472
    %v1167 = vlog2.pop %v1147
    %v1168 = vmul.f32 %v1167, 0.6931472
    %v1169 = vlog2.pop %v1148
    %v1170 = vmul.f32 %v1169, 0.6931472
    %v1171 = vlog2.pop %v1149
    %v1172 = vmul.f32 %v1171, 0.6931472
    %v1173 = vlog2.pop %v1150
    %v1174 = vmul.f32 %v1173, 0.6931472
    %v1175 = vlog2.pop %v1151
    %v1176 = vmul.f32 %v1175, 0.6931472
    %v1177 = vlog2.pop %v1152
    %v1178 = vmul.f32 %v1177, 0.6931472
    %v1179 = vlog2.pop %v1153
    %v1180 = vmul.f32 %v1179, 0.6931472
    %v1181 = vlog2.pop %v1154
    %v1182 = vmul.f32 %v1181, 0.6931472
    %v1183 = vlog2.pop %v1155
    %v1184 = vmul.f32 %v1183, 0.6931472
    %v1185 = vlog2.pop %v1156
    %v1186 = vmul.f32 %v1185, 0.6931472
    %v1187 = vlog2.pop %v1157
    %v1188 = vmul.f32 %v1187, 0.6931472
    %v1189 = vlog2.pop %v1158
    %v1190 = vmul.f32 %v1189, 0.6931472
    %v1191 = vadd.f32 %v1127, %v1160
    %v1192 = vadd.f32 %v1128, %v1162
    %v1193 = vadd.f32 %v1129, %v1164
    %v1194 = vadd.f32 %v1130, %v1166
    %v1195 = vadd.f32 %v1131, %v1168
    %v1196 = vadd.f32 %v1132, %v1170
    %v1197 = vadd.f32 %v1133, %v1172
    %v1198 = vadd.f32 %v1134, %v1174
    %v1199 = vadd.f32 %v1135, %v1176
    %v1200 = vadd.f32 %v1136, %v1178
    %v1201 = vadd.f32 %v1137, %v1180
    %v1202 = vadd.f32 %v1138, %v1182
    %v1203 = vadd.f32 %v1139, %v1184
    %v1204 = vadd.f32 %v1140, %v1186
    %v1205 = vadd.f32 %v1141, %v1188
    %v1206 = vadd.f32 %v1142, %v1190
    %v1207 = vld [vmem:[#allocation6] sm:$0xff]
    %v1208 = vld [vmem:[#allocation6 + $0x8] sm:$0xff]
    %v1209 = vld [vmem:[#allocation6 + $0x10] sm:$0xff]
    %v1210 = vld [vmem:[#allocation6 + $0x18] sm:$0xff]
    %v1211 = vld [vmem:[#allocation6 + $0x20] sm:$0xff]
    %v1212 = vld [vmem:[#allocation6 + $0x28] sm:$0xff]
    %v1213 = vld [vmem:[#allocation6 + $0x30] sm:$0xff]
    %v1214 = vld [vmem:[#allocation6 + $0x38] sm:$0xff]
    %v1215 = vld [vmem:[#allocation6 + $0x40] sm:$0xff]
    %v1216 = vld [vmem:[#allocation6 + $0x48] sm:$0xff]
    %v1217 = vld [vmem:[#allocation6 + $0x50] sm:$0xff]
    %v1218 = vld [vmem:[#allocation6 + $0x58] sm:$0xff]
    %v1219 = vld [vmem:[#allocation6 + $0x60] sm:$0xff]
    %v1220 = vld [vmem:[#allocation6 + $0x68] sm:$0xff]
    %v1221 = vld [vmem:[#allocation6 + $0x70] sm:$0xff]
    %v1222 = vld [vmem:[#allocation6 + $0x78] sm:$0xff]
    %v1223 = vsub.f32 %v1207, 1.0
    %v1224 = vsub.f32 %v1208, 1.0
    %v1225 = vsub.f32 %v1209, 1.0
    %v1226 = vsub.f32 %v1210, 1.0
    %v1227 = vsub.f32 %v1211, 1.0
    %v1228 = vsub.f32 %v1212, 1.0
    %v1229 = vsub.f32 %v1213, 1.0
    %v1230 = vsub.f32 %v1214, 1.0
    %v1231 = vsub.f32 %v1215, 1.0
    %v1232 = vsub.f32 %v1216, 1.0
    %v1233 = vsub.f32 %v1217, 1.0
    %v1234 = vsub.f32 %v1218, 1.0
    %v1235 = vsub.f32 %v1219, 1.0
    %v1236 = vsub.f32 %v1220, 1.0
    %v1237 = vsub.f32 %v1221, 1.0
    %v1238 = vsub.f32 %v1222, 1.0
    %v1239 = vld [vmem:[#allocation5] sm:$0xff]
    %v1240 = vld [vmem:[#allocation5 + $0x8] sm:$0xff]
    %v1241 = vld [vmem:[#allocation5 + $0x10] sm:$0xff]
    %v1242 = vld [vmem:[#allocation5 + $0x18] sm:$0xff]
    %v1243 = vld [vmem:[#allocation5 + $0x20] sm:$0xff]
    %v1244 = vld [vmem:[#allocation5 + $0x28] sm:$0xff]
    %v1245 = vld [vmem:[#allocation5 + $0x30] sm:$0xff]
    %v1246 = vld [vmem:[#allocation5 + $0x38] sm:$0xff]
    %v1247 = vld [vmem:[#allocation5 + $0x40] sm:$0xff]
    %v1248 = vld [vmem:[#allocation5 + $0x48] sm:$0xff]
    %v1249 = vld [vmem:[#allocation5 + $0x50] sm:$0xff]
    %v1250 = vld [vmem:[#allocation5 + $0x58] sm:$0xff]
    %v1251 = vld [vmem:[#allocation5 + $0x60] sm:$0xff]
    %v1252 = vld [vmem:[#allocation5 + $0x68] sm:$0xff]
    %v1253 = vld [vmem:[#allocation5 + $0x70] sm:$0xff]
    %v1254 = vld [vmem:[#allocation5 + $0x78] sm:$0xff]
    %v1255 = vsub.f32 %v1239, 14.285714
    %v1256 = vsub.f32 %v1240, 14.285714
    %v1257 = vsub.f32 %v1241, 14.285714
    %v1258 = vsub.f32 %v1242, 14.285714
    %v1259 = vsub.f32 %v1243, 14.285714
    %v1260 = vsub.f32 %v1244, 14.285714
    %v1261 = vsub.f32 %v1245, 14.285714
    %v1262 = vsub.f32 %v1246, 14.285714
    %v1263 = vsub.f32 %v1247, 14.285714
    %v1264 = vsub.f32 %v1248, 14.285714
    %v1265 = vsub.f32 %v1249, 14.285714
    %v1266 = vsub.f32 %v1250, 14.285714
    %v1267 = vsub.f32 %v1251, 14.285714
    %v1268 = vsub.f32 %v1252, 14.285714
    %v1269 = vsub.f32 %v1253, 14.285714
    %v1270 = vsub.f32 %v1254, 14.285714
    %v1271 = vmul.f32 %v1223, %v1191
    %v1272 = vmul.f32 %v1224, %v1192
    %v1273 = vmul.f32 %v1225, %v1193
    %v1274 = vmul.f32 %v1226, %v1194
    %v1275 = vmul.f32 %v1227, %v1195
    %v1276 = vmul.f32 %v1228, %v1196
    %v1277 = vmul.f32 %v1229, %v1197
    %v1278 = vmul.f32 %v1230, %v1198
    %v1279 = vmul.f32 %v1231, %v1199
    %v1280 = vmul.f32 %v1232, %v1200
    %v1281 = vmul.f32 %v1233, %v1201
    %v1282 = vmul.f32 %v1234, %v1202
    %v1283 = vmul.f32 %v1235, %v1203
    %v1284 = vmul.f32 %v1236, %v1204
    %v1285 = vmul.f32 %v1237, %v1205
    %v1286 = vmul.f32 %v1238, %v1206
    %v1287 = vsub.f32 %v1255, %v1271
    %v1288 = vsub.f32 %v1256, %v1272
    %v1289 = vsub.f32 %v1257, %v1273
    %v1290 = vsub.f32 %v1258, %v1274
    %v1291 = vsub.f32 %v1259, %v1275
    %v1292 = vsub.f32 %v1260, %v1276
    %v1293 = vsub.f32 %v1261, %v1277
    %v1294 = vsub.f32 %v1262, %v1278
    %v1295 = vsub.f32 %v1263, %v1279
    %v1296 = vsub.f32 %v1264, %v1280
    %v1297 = vsub.f32 %v1265, %v1281
    %v1298 = vsub.f32 %v1266, %v1282
    %v1299 = vsub.f32 %v1267, %v1283
    %v1300 = vsub.f32 %v1268, %v1284
    %v1301 = vsub.f32 %v1269, %v1285
    %v1302 = vsub.f32 %v1270, %v1286
    %v1303 = vrcp.pop %v1223
    %v1304 = vmul.f32 %v1287, %v1303
    %v1305 = vrcp.pop %v1224
    %v1306 = vmul.f32 %v1288, %v1305
    %v1307 = vrcp.pop %v1225
    %v1308 = vmul.f32 %v1289, %v1307
    %v1309 = vrcp.pop %v1226
    %v1310 = vmul.f32 %v1290, %v1309
    %v1311 = vrcp.pop %v1227
    %v1312 = vmul.f32 %v1291, %v1311
    %v1313 = vrcp.pop %v1228
    %v1314 = vmul.f32 %v1292, %v1313
    %v1315 = vrcp.pop %v1229
    %v1316 = vmul.f32 %v1293, %v1315
    %v1317 = vrcp.pop %v1230
    %v1318 = vmul.f32 %v1294, %v1317
    %v1319 = vrcp.pop %v1231
    %v1320 = vmul.f32 %v1295, %v1319
    %v1321 = vrcp.pop %v1232
    %v1322 = vmul.f32 %v1296, %v1321
    %v1323 = vrcp.pop %v1233
    %v1324 = vmul.f32 %v1297, %v1323
    %v1325 = vrcp.pop %v1234
    %v1326 = vmul.f32 %v1298, %v1325
    %v1327 = vrcp.pop %v1235
    %v1328 = vmul.f32 %v1299, %v1327
    %v1329 = vrcp.pop %v1236
    %v1330 = vmul.f32 %v1300, %v1329
    %v1331 = vrcp.pop %v1237
    %v1332 = vmul.f32 %v1301, %v1331
    %v1333 = vrcp.pop %v1238
    %v1334 = vmul.f32 %v1302, %v1333
    %1335 = vst.msk [vmem:[%s7] sm:$0xff] %vm915, %v1304
    %1336 = vst.msk [vmem:[%s7 + $0x8] sm:$0xff] %vm915, %v1306
    %1337 = vst.msk [vmem:[%s7 + $0x10] sm:$0xff] %vm915, %v1308
    %1338 = vst.msk [vmem:[%s7 + $0x18] sm:$0xff] %vm915, %v1310
    %1339 = vst.msk [vmem:[%s7 + $0x20] sm:$0xff] %vm915, %v1312
    %1340 = vst.msk [vmem:[%s7 + $0x28] sm:$0xff] %vm915, %v1314
    %1341 = vst.msk [vmem:[%s7 + $0x30] sm:$0xff] %vm915, %v1316
    %1342 = vst.msk [vmem:[%s7 + $0x38] sm:$0xff] %vm915, %v1318
    %1343 = vst.msk [vmem:[%s7 + $0x40] sm:$0xff] %vm915, %v1320
    %1344 = vst.msk [vmem:[%s7 + $0x48] sm:$0xff] %vm915, %v1322
    %1345 = vst.msk [vmem:[%s7 + $0x50] sm:$0xff] %vm915, %v1324
    %1346 = vst.msk [vmem:[%s7 + $0x58] sm:$0xff] %vm915, %v1326
    %1347 = vst.msk [vmem:[%s7 + $0x60] sm:$0xff] %vm915, %v1328
    %1348 = vst.msk [vmem:[%s7 + $0x68] sm:$0xff] %vm915, %v1330
    %1349 = vst.msk [vmem:[%s7 + $0x70] sm:$0xff] %vm915, %v1332
    %1350 = vst.msk [vmem:[%s7 + $0x78] sm:$0xff] %vm915, %v1334
  $region37: #{tpu_custom_call.1} parent=0 // pred_fallthru
    _
  // Predicated region
  $region38: #{tpu_custom_call.1} parent=0 // pred_check
    _
  $region39: #{tpu_custom_call.1} parent=0 // pred_check_branch
    %1352 = sbr.rel (0) target = $region41
  $region40: #{tpu_custom_call.1} parent=0 // pred_region
    _
  $region41: #{tpu_custom_call.1} parent=0 // pred_fallthru
    _
  // Predicated region
  $region42: #{tpu_custom_call.1} parent=0 // pred_check
    _
  $region43: #{tpu_custom_call.1} parent=0 // pred_check_branch
    %1354 = sbr.rel (0) target = $region45
  $region44: #{tpu_custom_call.1} parent=0 // pred_region
    _
  $region45: #{tpu_custom_call.1} parent=0 // pred_fallthru
    _

</llo_original>
